<compile_context>
chip_gen: v7x
topology: tpu7x:2x2x1
jax: 0.10.0
libtpu: 0.0.40
codegen_flags: <defaults>
</compile_context>

<pallas_src>
import jax
import jax.numpy as jnp
import numpy as np
from jax.experimental import pallas as pl
from jax.experimental.pallas import tpu as pltpu


# ------------------------------ fused kernel -------------------------------- #

def _down_fused_kernel(x_ref, w1_ref, t1_ref, w2_ref, t2_ref, o_ref,
                       xpad_ref, hpad_ref):
    # x_ref:    (1, Hp, 2, Wp, 2*Cin) bf16   NHWC input, 2x2 pool window exposed
    # w1_ref:   (9*Cin,  Cmid) bf16          conv1 im2col weights (BN1 scale folded in)
    # t1_ref:   (1, Cmid)      f32           BN1 shift
    # w2_ref:   (9*Cmid, Cout) bf16          conv2 im2col weights (BN2 scale folded in)
    # t2_ref:   (1, Cout)      f32           BN2 shift
    # o_ref:    (1, Hp, Wp*Cout) bf16        lane-packed output
    # xpad_ref: (Hp+2, Wp+2, Cin)  f32 VMEM  SAME-padding halo scratch for conv1
    # hpad_ref: (Hp+2, Wp+2, Cmid) f32 VMEM  SAME-padding halo scratch for conv2
    Hp, Wp = x_ref.shape[1], x_ref.shape[3]
    Cin = x_ref.shape[4] // 2
    Cmid = w1_ref.shape[1]
    Cout = w2_ref.shape[1]

    # ---- zero ONLY the 1-element halo ring (interior is fully rewritten below).
    # Done every step so correctness never depends on scratch persistence across
    # grid steps / TensorCores (safe under "parallel" grid sharding on v7x).
    xpad_ref[0:1, :, :] = jnp.zeros((1, Wp + 2, Cin), jnp.float32)
    xpad_ref[Hp + 1:Hp + 2, :, :] = jnp.zeros((1, Wp + 2, Cin), jnp.float32)
    xpad_ref[1:Hp + 1, 0:1, :] = jnp.zeros((Hp, 1, Cin), jnp.float32)
    xpad_ref[1:Hp + 1, Wp + 1:Wp + 2, :] = jnp.zeros((Hp, 1, Cin), jnp.float32)
    hpad_ref[0:1, :, :] = jnp.zeros((1, Wp + 2, Cmid), jnp.float32)
    hpad_ref[Hp + 1:Hp + 2, :, :] = jnp.zeros((1, Wp + 2, Cmid), jnp.float32)
    hpad_ref[1:Hp + 1, 0:1, :] = jnp.zeros((Hp, 1, Cmid), jnp.float32)
    hpad_ref[1:Hp + 1, Wp + 1:Wp + 2, :] = jnp.zeros((Hp, 1, Cmid), jnp.float32)

    # ---- 2x2 max-pool (stride 2), fully in VMEM ----
    r0 = x_ref[0, :, 0, :, :]                               # rows 2i   (Hp, Wp, 2*Cin)
    r1 = x_ref[0, :, 1, :, :]                               # rows 2i+1 (Hp, Wp, 2*Cin)
    rm = jnp.maximum(r0, r1)                                # pooled over the row pair
    pooled = jnp.maximum(rm[..., :Cin], rm[..., Cin:])      # (Hp, Wp, Cin)
    xpad_ref[1:Hp + 1, 1:Wp + 1, :] = pooled.astype(jnp.float32)

    # ---- conv1 + BN1 + ReLU: im2col -> ONE MXU matmul ----
    lhs1 = jnp.concatenate(
        [xpad_ref[kh:kh + Hp, kw:kw + Wp, :]
         for kh in range(3) for kw in range(3)], axis=-1)   # (Hp, Wp, 9*Cin) f32
    acc1 = jnp.dot(lhs1.reshape(Hp * Wp, 9 * Cin).astype(jnp.bfloat16),
                   w1_ref[...], preferred_element_type=jnp.float32)
    h = jnp.maximum(acc1 + t1_ref[0], 0.0)                  # (Hp*Wp, Cmid) f32
    hpad_ref[1:Hp + 1, 1:Wp + 1, :] = h.reshape(Hp, Wp, Cmid)

    # ---- conv2 + BN2 + ReLU: im2col -> ONE MXU matmul ----
    lhs2 = jnp.concatenate(
        [hpad_ref[kh:kh + Hp, kw:kw + Wp, :]
         for kh in range(3) for kw in range(3)], axis=-1)   # (Hp, Wp, 9*Cmid) f32
    acc2 = jnp.dot(lhs2.reshape(Hp * Wp, 9 * Cmid).astype(jnp.bfloat16),
                   w2_ref[...], preferred_element_type=jnp.float32)
    y = jnp.maximum(acc2 + t2_ref[0], 0.0)                  # (Hp*Wp, Cout) f32
    y3 = y.reshape(Hp, Wp, Cout)

    # ---- lane-packed store: (Hp, Wp*Cout) bf16 (wrapper unflattens back to NHWC) ----
    o_ref[0] = jnp.concatenate(
        [y3[:, w, :] for w in range(Wp)], axis=-1).astype(jnp.bfloat16)


# -------------------------------- wrapper ------------------------------------ #

def fold_bn(gamma, beta, running_mean, running_var, eps=1e-5):
    scale = gamma / jnp.sqrt(running_var + eps)
    shift = beta - running_mean * scale
    return scale, shift


def down_forward(x_nchw, params):
    """Down.forward: maxpool(2) -> conv3x3 -> BN -> ReLU -> conv3x3 -> BN -> ReLU."""
    N, Cin, H, W = x_nchw.shape
    assert H % 2 == 0 and W % 2 == 0, "MaxPool2d(2) assumes even spatial dims"
    Hp, Wp = H // 2, W // 2
    Cmid = params["w1"].shape[-1]
    Cout = params["w2"].shape[-1]

    # NCHW -> NHWC, bf16, expose the 2x2 pooling pairs: (N, Hp, 2, Wp, 2*Cin).
    x = jnp.transpose(x_nchw, (0, 2, 3, 1)).astype(jnp.bfloat16)
    x5 = x.reshape(N, Hp, 2, Wp, 2 * Cin)

    # Fold BN (eval mode) into the conv weights: conv(x, w*s) + t == s*conv(x, w) + t.
    # TODO(synk): training-mode BatchNorm (batch statistics) is not implemented; this is
    # the eval-mode forward with running stats, matching nn.BatchNorm2d.eval().
    s1, t1 = fold_bn(params["g1"], params["b1"], params["rm1"], params["rv1"])
    s2, t2 = fold_bn(params["g2"], params["b2"], params["rm2"], params["rv2"])
    # HWIO (3,3,Ci,Co) -> im2col (9*Ci, Co) with (kh, kw, ci) ordering on the K dim.
    w1 = (params["w1"] * s1).astype(jnp.bfloat16).reshape(9 * Cin, Cmid)
    w2 = (params["w2"] * s2).astype(jnp.bfloat16).reshape(9 * Cmid, Cout)
    t1 = t1.reshape(1, Cmid).astype(jnp.float32)
    t2 = t2.reshape(1, Cout).astype(jnp.float32)

    flops = 2 * N * Hp * Wp * 9 * (Cin * Cmid + Cmid * Cout)
    bytes_accessed = (x5.size * 2 + w1.size * 2 + w2.size * 2
                      + t1.size * 4 + t2.size * 4 + N * Hp * Wp * Cout * 2)

    out = pl.pallas_call(
        _down_fused_kernel,
        out_shape=jax.ShapeDtypeStruct((N, Hp, Wp * Cout), jnp.bfloat16),
        grid_spec=pltpu.PrefetchScalarGridSpec(
            num_scalar_prefetch=0,
            grid=(N,),
            in_specs=[
                pl.BlockSpec((1, Hp, 2, Wp, 2 * Cin), lambda n: (n, 0, 0, 0, 0)),
                pl.BlockSpec((9 * Cin, Cmid), lambda n: (0, 0)),
                pl.BlockSpec((1, Cmid), lambda n: (0, 0)),
                pl.BlockSpec((9 * Cmid, Cout), lambda n: (0, 0)),
                pl.BlockSpec((1, Cout), lambda n: (0, 0)),
            ],
            out_specs=pl.BlockSpec((1, Hp, Wp * Cout), lambda n: (n, 0, 0)),
            scratch_shapes=[
                pltpu.VMEM((Hp + 2, Wp + 2, Cin), jnp.float32),
                pltpu.VMEM((Hp + 2, Wp + 2, Cmid), jnp.float32),
            ],
        ),
        compiler_params=pltpu.CompilerParams(
            dimension_semantics=("parallel",),
            vmem_limit_bytes=32 * 1024 * 1024,
        ),
        cost_estimate=pl.CostEstimate(flops=flops, transcendentals=0,
                                      bytes_accessed=bytes_accessed),
    )(x5, w1, t1, w2, t2)

    # Lane-packed (N, Hp, Wp*Cout) -> NHWC -> NCHW f32 (PyTorch output layout/dtype).
    out_nhwc = out.reshape(N, Hp, Wp, Cout)
    return jnp.transpose(out_nhwc, (0, 3, 1, 2)).astype(jnp.float32)


# ----------------------- deterministic parameter init ------------------------ #

def make_params(key, in_planes, out_planes):
    mid_planes = out_planes  # DoubleConv default: mid = out
    ks = jax.random.split(key, 10)
    std1 = (2.0 / (in_planes * 9)) ** 0.5
    std2 = (2.0 / (mid_planes * 9)) ** 0.5
    return dict(
        # conv weights stored HWIO (3,3,Cin,Cout) for the NHWC kernel
        w1=std1 * jax.random.normal(ks[0], (3, 3, in_planes, mid_planes), jnp.float32),
        g1=1.0 + 0.1 * jax.random.normal(ks[1], (mid_planes,), jnp.float32),
        b1=0.1 * jax.random.normal(ks[2], (mid_planes,), jnp.float32),
        rm1=0.1 * jax.random.normal(ks[3], (mid_planes,), jnp.float32),
        rv1=1.0 + 0.5 * jax.random.uniform(ks[4], (mid_planes,), jnp.float32),
        w2=std2 * jax.random.normal(ks[5], (3, 3, mid_planes, out_planes), jnp.float32),
        g2=1.0 + 0.1 * jax.random.normal(ks[6], (out_planes,), jnp.float32),
        b2=0.1 * jax.random.normal(ks[7], (out_planes,), jnp.float32),
        rm2=0.1 * jax.random.normal(ks[8], (out_planes,), jnp.float32),
        rv2=1.0 + 0.5 * jax.random.uniform(ks[9], (out_planes,), jnp.float32),
    )


# ------------------------------- pure-JAX ref --------------------------------- #

def down_forward_ref(x_nchw, params):
    x = jnp.transpose(x_nchw, (0, 2, 3, 1))
    x = jax.lax.reduce_window(x, -jnp.inf, jax.lax.max,
                              (1, 2, 2, 1), (1, 2, 2, 1), "VALID")

    def cbr(x, w, g, b, rm, rv):
        y = jax.lax.conv_general_dilated(
            x, w, window_strides=(1, 1), padding="SAME",
            dimension_numbers=("NHWC", "HWIO", "NHWC"))
        s, t = fold_bn(g, b, rm, rv)
        return jnp.maximum(y * s + t, 0.0)

    x = cbr(x, params["w1"], params["g1"], params["b1"], params["rm1"], params["rv1"])
    x = cbr(x, params["w2"], params["g2"], params["b2"], params["rm2"], params["rv2"])
    return jnp.transpose(x, (0, 3, 1, 2))


# ----------------------------------- main -------------------------------------- #

if __name__ == "__main__":
    key = jax.random.PRNGKey(0)
    k_x, k_p = jax.random.split(key)

    N, C_in, H, W = 2, 4, 16, 16
    C_out = 8
    x = jax.random.normal(k_x, (N, C_in, H, W), jnp.float32)   # PyTorch NCHW input
    params = make_params(k_p, C_in, C_out)

    out = jax.jit(down_forward)(x, params)
    out = jax.block_until_ready(out)

    assert out.shape == (N, C_out, H // 2, W // 2), out.shape

    ref = jax.block_until_ready(down_forward_ref(x, params))
    # Kernel uses bf16 MXU operands and a bf16 output; reference is full f32,
    # so compare with bf16-appropriate tolerances.
    np.testing.assert_allclose(np.asarray(out), np.asarray(ref), rtol=5e-2, atol=5e-2)

    print("KERNEL_OK")
</pallas_src>

<mosaic_0001>
module attributes {stable_mosaic.version = 11 : i64} {
  func.func @_down_fused_kernel(%arg0: i32, %arg1: memref<1x8x2x8x8xbf16, #tpu.memory_space<vmem>>, %arg2: memref<36x8xbf16, #tpu.memory_space<vmem>>, %arg3: memref<1x8xf32, #tpu.memory_space<vmem>>, %arg4: memref<72x8xbf16, #tpu.memory_space<vmem>>, %arg5: memref<1x8xf32, #tpu.memory_space<vmem>>, %arg6: memref<1x8x64xbf16, #tpu.memory_space<vmem>>, %arg7: memref<10x10x4xf32, #tpu.memory_space<vmem>>, %arg8: memref<10x10x8xf32, #tpu.memory_space<vmem>>) attributes {dimension_semantics = [#tpu.dimension_semantics<parallel>], iteration_bounds = array<i64: 2>, scalar_prefetch = 0 : i64, scratch_operands = 2 : i64, tpu.core_type = #tpu.core_type<tc>, window_params = [{transform_indices = @transform_0, window_bounds = array<i64: 1, 8, 2, 8, 8>}, {pipeline_mode = #tpu.pipeline_mode<synchronous>, transform_indices = @transform_1, window_bounds = array<i64: 36, 8>}, {pipeline_mode = #tpu.pipeline_mode<synchronous>, transform_indices = @transform_2, window_bounds = array<i64: 1, 8>}, {pipeline_mode = #tpu.pipeline_mode<synchronous>, transform_indices = @transform_3, window_bounds = array<i64: 72, 8>}, {pipeline_mode = #tpu.pipeline_mode<synchronous>, transform_indices = @transform_4, window_bounds = array<i64: 1, 8>}, {transform_indices = @transform_5, window_bounds = array<i64: 1, 8, 64>}]} {
    %cst = arith.constant 0.000000e+00 : f32
    %0 = vector.broadcast %cst : f32 to vector<1x10x4xf32>
    %c0 = arith.constant 0 : index
    %c0_0 = arith.constant 0 : index
    %c0_1 = arith.constant 0 : index
    %1 = vector.load %arg7[%c0, %c0_0, %c0_1] : memref<10x10x4xf32, #tpu.memory_space<vmem>>, vector<1x10x4xf32>
    tpu.vector_store %arg7[%c0, %c0_0, %c0_1], %0 {strides = array<i32>} : memref<10x10x4xf32, #tpu.memory_space<vmem>>, vector<1x10x4xf32>,
    %cst_2 = arith.constant 0.000000e+00 : f32
    %2 = vector.broadcast %cst_2 : f32 to vector<1x10x4xf32>
    %c9 = arith.constant 9 : index
    %c0_3 = arith.constant 0 : index
    %c0_4 = arith.constant 0 : index
    %3 = vector.load %arg7[%c9, %c0_3, %c0_4] : memref<10x10x4xf32, #tpu.memory_space<vmem>>, vector<1x10x4xf32>
    tpu.vector_store %arg7[%c9, %c0_3, %c0_4], %2 {strides = array<i32>} : memref<10x10x4xf32, #tpu.memory_space<vmem>>, vector<1x10x4xf32>,
    %cst_5 = arith.constant 0.000000e+00 : f32
    %4 = vector.broadcast %cst_5 : f32 to vector<8x1x4xf32>
    %c1 = arith.constant 1 : index
    %c0_6 = arith.constant 0 : index
    %c0_7 = arith.constant 0 : index
    %5 = vector.load %arg7[%c1, %c0_6, %c0_7] : memref<10x10x4xf32, #tpu.memory_space<vmem>>, vector<8x1x4xf32>
    tpu.vector_store %arg7[%c1, %c0_6, %c0_7], %4 {strides = array<i32>} : memref<10x10x4xf32, #tpu.memory_space<vmem>>, vector<8x1x4xf32>,
    %cst_8 = arith.constant 0.000000e+00 : f32
    %6 = vector.broadcast %cst_8 : f32 to vector<8x1x4xf32>
    %c1_9 = arith.constant 1 : index
    %c9_10 = arith.constant 9 : index
    %c0_11 = arith.constant 0 : index
    %7 = vector.load %arg7[%c1_9, %c9_10, %c0_11] : memref<10x10x4xf32, #tpu.memory_space<vmem>>, vector<8x1x4xf32>
    tpu.vector_store %arg7[%c1_9, %c9_10, %c0_11], %6 {strides = array<i32>} : memref<10x10x4xf32, #tpu.memory_space<vmem>>, vector<8x1x4xf32>,
    %cst_12 = arith.constant 0.000000e+00 : f32
    %8 = vector.broadcast %cst_12 : f32 to vector<1x10x8xf32>
    %c0_13 = arith.constant 0 : index
    %c0_14 = arith.constant 0 : index
    %c0_15 = arith.constant 0 : index
    %9 = vector.load %arg8[%c0_13, %c0_14, %c0_15] : memref<10x10x8xf32, #tpu.memory_space<vmem>>, vector<1x10x8xf32>
    tpu.vector_store %arg8[%c0_13, %c0_14, %c0_15], %8 {strides = array<i32>} : memref<10x10x8xf32, #tpu.memory_space<vmem>>, vector<1x10x8xf32>,
    %cst_16 = arith.constant 0.000000e+00 : f32
    %10 = vector.broadcast %cst_16 : f32 to vector<1x10x8xf32>
    %c9_17 = arith.constant 9 : index
    %c0_18 = arith.constant 0 : index
    %c0_19 = arith.constant 0 : index
    %11 = vector.load %arg8[%c9_17, %c0_18, %c0_19] : memref<10x10x8xf32, #tpu.memory_space<vmem>>, vector<1x10x8xf32>
    tpu.vector_store %arg8[%c9_17, %c0_18, %c0_19], %10 {strides = array<i32>} : memref<10x10x8xf32, #tpu.memory_space<vmem>>, vector<1x10x8xf32>,
    %cst_20 = arith.constant 0.000000e+00 : f32
    %12 = vector.broadcast %cst_20 : f32 to vector<8x1x8xf32>
    %c1_21 = arith.constant 1 : index
    %c0_22 = arith.constant 0 : index
    %c0_23 = arith.constant 0 : index
    %13 = vector.load %arg8[%c1_21, %c0_22, %c0_23] : memref<10x10x8xf32, #tpu.memory_space<vmem>>, vector<8x1x8xf32>
    tpu.vector_store %arg8[%c1_21, %c0_22, %c0_23], %12 {strides = array<i32>} : memref<10x10x8xf32, #tpu.memory_space<vmem>>, vector<8x1x8xf32>,
    %cst_24 = arith.constant 0.000000e+00 : f32
    %14 = vector.broadcast %cst_24 : f32 to vector<8x1x8xf32>
    %c1_25 = arith.constant 1 : index
    %c9_26 = arith.constant 9 : index
    %c0_27 = arith.constant 0 : index
    %15 = vector.load %arg8[%c1_25, %c9_26, %c0_27] : memref<10x10x8xf32, #tpu.memory_space<vmem>>, vector<8x1x8xf32>
    tpu.vector_store %arg8[%c1_25, %c9_26, %c0_27], %14 {strides = array<i32>} : memref<10x10x8xf32, #tpu.memory_space<vmem>>, vector<8x1x8xf32>,
    %c0_28 = arith.constant 0 : index
    %c0_29 = arith.constant 0 : index
    %c0_30 = arith.constant 0 : index
    %c0_31 = arith.constant 0 : index
    %c0_32 = arith.constant 0 : index
    %16 = vector.load %arg1[%c0_28, %c0_29, %c0_30, %c0_31, %c0_32] : memref<1x8x2x8x8xbf16, #tpu.memory_space<vmem>>, vector<1x8x1x8x8xbf16>
    %17 = vector.shape_cast %16 : vector<1x8x1x8x8xbf16> to vector<8x8x8xbf16>
    %c0_33 = arith.constant 0 : index
    %c0_34 = arith.constant 0 : index
    %c1_35 = arith.constant 1 : index
    %c0_36 = arith.constant 0 : index
    %c0_37 = arith.constant 0 : index
    %18 = vector.load %arg1[%c0_33, %c0_34, %c1_35, %c0_36, %c0_37] : memref<1x8x2x8x8xbf16, #tpu.memory_space<vmem>>, vector<1x8x1x8x8xbf16>
    %19 = vector.shape_cast %18 : vector<1x8x1x8x8xbf16> to vector<8x8x8xbf16>
    %20 = arith.maximumf %17, %19 : vector<8x8x8xbf16>
    %21 = vector.extract_strided_slice %20 {offsets = [0, 0, 0], sizes = [8, 8, 4], strides = [1, 1, 1]} : vector<8x8x8xbf16> to vector<8x8x4xbf16>
    %22 = vector.extract_strided_slice %20 {offsets = [0, 0, 4], sizes = [8, 8, 4], strides = [1, 1, 1]} : vector<8x8x8xbf16> to vector<8x8x4xbf16>
    %23 = arith.maximumf %21, %22 : vector<8x8x4xbf16>
    %24 = arith.extf %23 : vector<8x8x4xbf16> to vector<8x8x4xf32>
    %c1_38 = arith.constant 1 : index
    %c1_39 = arith.constant 1 : index
    %c0_40 = arith.constant 0 : index
    %25 = vector.load %arg7[%c1_38, %c1_39, %c0_40] : memref<10x10x4xf32, #tpu.memory_space<vmem>>, vector<8x8x4xf32>
    tpu.vector_store %arg7[%c1_38, %c1_39, %c0_40], %24 {strides = array<i32>} : memref<10x10x4xf32, #tpu.memory_space<vmem>>, vector<8x8x4xf32>,
    %c0_41 = arith.constant 0 : index
    %c0_42 = arith.constant 0 : index
    %c0_43 = arith.constant 0 : index
    %26 = vector.load %arg7[%c0_41, %c0_42, %c0_43] : memref<10x10x4xf32, #tpu.memory_space<vmem>>, vector<8x8x4xf32>
    %c0_44 = arith.constant 0 : index
    %c1_45 = arith.constant 1 : index
    %c0_46 = arith.constant 0 : index
    %27 = vector.load %arg7[%c0_44, %c1_45, %c0_46] : memref<10x10x4xf32, #tpu.memory_space<vmem>>, vector<8x8x4xf32>
    %c0_47 = arith.constant 0 : index
    %c2 = arith.constant 2 : index
    %c0_48 = arith.constant 0 : index
    %28 = vector.load %arg7[%c0_47, %c2, %c0_48] : memref<10x10x4xf32, #tpu.memory_space<vmem>>, vector<8x8x4xf32>
    %c1_49 = arith.constant 1 : index
    %c0_50 = arith.constant 0 : index
    %c0_51 = arith.constant 0 : index
    %29 = vector.load %arg7[%c1_49, %c0_50, %c0_51] : memref<10x10x4xf32, #tpu.memory_space<vmem>>, vector<8x8x4xf32>
    %c1_52 = arith.constant 1 : index
    %c1_53 = arith.constant 1 : index
    %c0_54 = arith.constant 0 : index
    %30 = vector.load %arg7[%c1_52, %c1_53, %c0_54] : memref<10x10x4xf32, #tpu.memory_space<vmem>>, vector<8x8x4xf32>
    %c1_55 = arith.constant 1 : index
    %c2_56 = arith.constant 2 : index
    %c0_57 = arith.constant 0 : index
    %31 = vector.load %arg7[%c1_55, %c2_56, %c0_57] : memref<10x10x4xf32, #tpu.memory_space<vmem>>, vector<8x8x4xf32>
    %c2_58 = arith.constant 2 : index
    %c0_59 = arith.constant 0 : index
    %c0_60 = arith.constant 0 : index
    %32 = vector.load %arg7[%c2_58, %c0_59, %c0_60] : memref<10x10x4xf32, #tpu.memory_space<vmem>>, vector<8x8x4xf32>
    %c2_61 = arith.constant 2 : index
    %c1_62 = arith.constant 1 : index
    %c0_63 = arith.constant 0 : index
    %33 = vector.load %arg7[%c2_61, %c1_62, %c0_63] : memref<10x10x4xf32, #tpu.memory_space<vmem>>, vector<8x8x4xf32>
    %c2_64 = arith.constant 2 : index
    %c2_65 = arith.constant 2 : index
    %c0_66 = arith.constant 0 : index
    %34 = vector.load %arg7[%c2_64, %c2_65, %c0_66] : memref<10x10x4xf32, #tpu.memory_space<vmem>>, vector<8x8x4xf32>
    %35 = tpu.concatenate %26, %27, %28, %29, %30, %31, %32, %33, %34 in 2 : vector<8x8x4xf32>, vector<8x8x4xf32>, vector<8x8x4xf32>, vector<8x8x4xf32>, vector<8x8x4xf32>, vector<8x8x4xf32>, vector<8x8x4xf32>, vector<8x8x4xf32>, vector<8x8x4xf32> -> vector<8x8x36xf32>
    %36 = vector.shape_cast %35 : vector<8x8x36xf32> to vector<64x36xf32>
    %37 = arith.truncf %36 : vector<64x36xf32> to vector<64x36xbf16>
    %c0_67 = arith.constant 0 : index
    %c0_68 = arith.constant 0 : index
    %38 = vector.load %arg2[%c0_67, %c0_68] : memref<36x8xbf16, #tpu.memory_space<vmem>>, vector<36x8xbf16>
    %cst_69 = arith.constant dense<0.000000e+00> : vector<64x8xf32>
    %39 = tpu.matmul %37, %38, %cst_69 {dimension_numbers = #tpu.dot_dimension_numbers<[1], [0], [0], [1], [0, 0, 1, 1], [], []>} : vector<64x36xbf16>, vector<36x8xbf16>, vector<64x8xf32> -> vector<64x8xf32>
    %c0_70 = arith.constant 0 : index
    %c0_71 = arith.constant 0 : index
    %40 = vector.load %arg3[%c0_70, %c0_71] : memref<1x8xf32, #tpu.memory_space<vmem>>, vector<1x8xf32>
    %41 = vector.shape_cast %40 : vector<1x8xf32> to vector<8xf32>
    %42 = vector.shape_cast %41 : vector<8xf32> to vector<1x8xf32>
    %43 = vector.broadcast %42 : vector<1x8xf32> to vector<64x8xf32>
    %44 = arith.addf %39, %43 : vector<64x8xf32>
    %cst_72 = arith.constant 0.000000e+00 : f32
    %45 = vector.broadcast %cst_72 : f32 to vector<64x8xf32>
    %46 = arith.maximumf %44, %45 : vector<64x8xf32>
    %47 = vector.shape_cast %46 : vector<64x8xf32> to vector<8x8x8xf32>
    %c1_73 = arith.constant 1 : index
    %c1_74 = arith.constant 1 : index
    %c0_75 = arith.constant 0 : index
    %48 = vector.load %arg8[%c1_73, %c1_74, %c0_75] : memref<10x10x8xf32, #tpu.memory_space<vmem>>, vector<8x8x8xf32>
    tpu.vector_store %arg8[%c1_73, %c1_74, %c0_75], %47 {strides = array<i32>} : memref<10x10x8xf32, #tpu.memory_space<vmem>>, vector<8x8x8xf32>,
    %c0_76 = arith.constant 0 : index
    %c0_77 = arith.constant 0 : index
    %c0_78 = arith.constant 0 : index
    %49 = vector.load %arg8[%c0_76, %c0_77, %c0_78] : memref<10x10x8xf32, #tpu.memory_space<vmem>>, vector<8x8x8xf32>
    %c0_79 = arith.constant 0 : index
    %c1_80 = arith.constant 1 : index
    %c0_81 = arith.constant 0 : index
    %50 = vector.load %arg8[%c0_79, %c1_80, %c0_81] : memref<10x10x8xf32, #tpu.memory_space<vmem>>, vector<8x8x8xf32>
    %c0_82 = arith.constant 0 : index
    %c2_83 = arith.constant 2 : index
    %c0_84 = arith.constant 0 : index
    %51 = vector.load %arg8[%c0_82, %c2_83, %c0_84] : memref<10x10x8xf32, #tpu.memory_space<vmem>>, vector<8x8x8xf32>
    %c1_85 = arith.constant 1 : index
    %c0_86 = arith.constant 0 : index
    %c0_87 = arith.constant 0 : index
    %52 = vector.load %arg8[%c1_85, %c0_86, %c0_87] : memref<10x10x8xf32, #tpu.memory_space<vmem>>, vector<8x8x8xf32>
    %c1_88 = arith.constant 1 : index
    %c1_89 = arith.constant 1 : index
    %c0_90 = arith.constant 0 : index
    %53 = vector.load %arg8[%c1_88, %c1_89, %c0_90] : memref<10x10x8xf32, #tpu.memory_space<vmem>>, vector<8x8x8xf32>
    %c1_91 = arith.constant 1 : index
    %c2_92 = arith.constant 2 : index
    %c0_93 = arith.constant 0 : index
    %54 = vector.load %arg8[%c1_91, %c2_92, %c0_93] : memref<10x10x8xf32, #tpu.memory_space<vmem>>, vector<8x8x8xf32>
    %c2_94 = arith.constant 2 : index
    %c0_95 = arith.constant 0 : index
    %c0_96 = arith.constant 0 : index
    %55 = vector.load %arg8[%c2_94, %c0_95, %c0_96] : memref<10x10x8xf32, #tpu.memory_space<vmem>>, vector<8x8x8xf32>
    %c2_97 = arith.constant 2 : index
    %c1_98 = arith.constant 1 : index
    %c0_99 = arith.constant 0 : index
    %56 = vector.load %arg8[%c2_97, %c1_98, %c0_99] : memref<10x10x8xf32, #tpu.memory_space<vmem>>, vector<8x8x8xf32>
    %c2_100 = arith.constant 2 : index
    %c2_101 = arith.constant 2 : index
    %c0_102 = arith.constant 0 : index
    %57 = vector.load %arg8[%c2_100, %c2_101, %c0_102] : memref<10x10x8xf32, #tpu.memory_space<vmem>>, vector<8x8x8xf32>
    %58 = tpu.concatenate %49, %50, %51, %52, %53, %54, %55, %56, %57 in 2 : vector<8x8x8xf32>, vector<8x8x8xf32>, vector<8x8x8xf32>, vector<8x8x8xf32>, vector<8x8x8xf32>, vector<8x8x8xf32>, vector<8x8x8xf32>, vector<8x8x8xf32>, vector<8x8x8xf32> -> vector<8x8x72xf32>
    %59 = vector.shape_cast %58 : vector<8x8x72xf32> to vector<64x72xf32>
    %60 = arith.truncf %59 : vector<64x72xf32> to vector<64x72xbf16>
    %c0_103 = arith.constant 0 : index
    %c0_104 = arith.constant 0 : index
    %61 = vector.load %arg4[%c0_103, %c0_104] : memref<72x8xbf16, #tpu.memory_space<vmem>>, vector<72x8xbf16>
    %cst_105 = arith.constant dense<0.000000e+00> : vector<64x8xf32>
    %62 = tpu.matmul %60, %61, %cst_105 {dimension_numbers = #tpu.dot_dimension_numbers<[1], [0], [0], [1], [0, 0, 1, 1], [], []>} : vector<64x72xbf16>, vector<72x8xbf16>, vector<64x8xf32> -> vector<64x8xf32>
    %c0_106 = arith.constant 0 : index
    %c0_107 = arith.constant 0 : index
    %63 = vector.load %arg5[%c0_106, %c0_107] : memref<1x8xf32, #tpu.memory_space<vmem>>, vector<1x8xf32>
    %64 = vector.shape_cast %63 : vector<1x8xf32> to vector<8xf32>
    %65 = vector.shape_cast %64 : vector<8xf32> to vector<1x8xf32>
    %66 = vector.broadcast %65 : vector<1x8xf32> to vector<64x8xf32>
    %67 = arith.addf %62, %66 : vector<64x8xf32>
    %cst_108 = arith.constant 0.000000e+00 : f32
    %68 = vector.broadcast %cst_108 : f32 to vector<64x8xf32>
    %69 = arith.maximumf %67, %68 : vector<64x8xf32>
    %70 = vector.shape_cast %69 : vector<64x8xf32> to vector<8x8x8xf32>
    %71 = vector.extract_strided_slice %70 {offsets = [0, 0, 0], sizes = [8, 1, 8], strides = [1, 1, 1]} : vector<8x8x8xf32> to vector<8x1x8xf32>
    %72 = vector.shape_cast %71 : vector<8x1x8xf32> to vector<8x8xf32>
    %73 = vector.extract_strided_slice %70 {offsets = [0, 1, 0], sizes = [8, 1, 8], strides = [1, 1, 1]} : vector<8x8x8xf32> to vector<8x1x8xf32>
    %74 = vector.shape_cast %73 : vector<8x1x8xf32> to vector<8x8xf32>
    %75 = vector.extract_strided_slice %70 {offsets = [0, 2, 0], sizes = [8, 1, 8], strides = [1, 1, 1]} : vector<8x8x8xf32> to vector<8x1x8xf32>
    %76 = vector.shape_cast %75 : vector<8x1x8xf32> to vector<8x8xf32>
    %77 = vector.extract_strided_slice %70 {offsets = [0, 3, 0], sizes = [8, 1, 8], strides = [1, 1, 1]} : vector<8x8x8xf32> to vector<8x1x8xf32>
    %78 = vector.shape_cast %77 : vector<8x1x8xf32> to vector<8x8xf32>
    %79 = vector.extract_strided_slice %70 {offsets = [0, 4, 0], sizes = [8, 1, 8], strides = [1, 1, 1]} : vector<8x8x8xf32> to vector<8x1x8xf32>
    %80 = vector.shape_cast %79 : vector<8x1x8xf32> to vector<8x8xf32>
    %81 = vector.extract_strided_slice %70 {offsets = [0, 5, 0], sizes = [8, 1, 8], strides = [1, 1, 1]} : vector<8x8x8xf32> to vector<8x1x8xf32>
    %82 = vector.shape_cast %81 : vector<8x1x8xf32> to vector<8x8xf32>
    %83 = vector.extract_strided_slice %70 {offsets = [0, 6, 0], sizes = [8, 1, 8], strides = [1, 1, 1]} : vector<8x8x8xf32> to vector<8x1x8xf32>
    %84 = vector.shape_cast %83 : vector<8x1x8xf32> to vector<8x8xf32>
    %85 = vector.extract_strided_slice %70 {offsets = [0, 7, 0], sizes = [8, 1, 8], strides = [1, 1, 1]} : vector<8x8x8xf32> to vector<8x1x8xf32>
    %86 = vector.shape_cast %85 : vector<8x1x8xf32> to vector<8x8xf32>
    %87 = tpu.concatenate %72, %74, %76, %78, %80, %82, %84, %86 in 1 : vector<8x8xf32>, vector<8x8xf32>, vector<8x8xf32>, vector<8x8xf32>, vector<8x8xf32>, vector<8x8xf32>, vector<8x8xf32>, vector<8x8xf32> -> vector<8x64xf32>
    %88 = arith.truncf %87 : vector<8x64xf32> to vector<8x64xbf16>
    %c0_109 = arith.constant 0 : index
    %c0_110 = arith.constant 0 : index
    %c0_111 = arith.constant 0 : index
    %89 = vector.load %arg6[%c0_109, %c0_110, %c0_111] : memref<1x8x64xbf16, #tpu.memory_space<vmem>>, vector<1x8x64xbf16>
    %90 = vector.shape_cast %89 : vector<1x8x64xbf16> to vector<8x64xbf16>
    %91 = vector.shape_cast %88 : vector<8x64xbf16> to vector<1x8x64xbf16>
    tpu.vector_store %arg6[%c0_109, %c0_110, %c0_111], %91 {strides = array<i32>} : memref<1x8x64xbf16, #tpu.memory_space<vmem>>, vector<1x8x64xbf16>,
    return
  }
  func.func @transform_0(%arg0: i32) -> (i32, i32, i32, i32, i32) {
    %c0_i32 = arith.constant 0 : i32
    %c0_i32_0 = arith.constant 0 : i32
    %c0_i32_1 = arith.constant 0 : i32
    %c0_i32_2 = arith.constant 0 : i32
    %c0_i32_3 = arith.constant 0 : i32
    return %arg0, %c0_i32, %c0_i32_0, %c0_i32_1, %c0_i32_2 : i32, i32, i32, i32, i32
  }
  func.func @transform_1(%arg0: i32) -> (i32, i32) {
    %c0_i32 = arith.constant 0 : i32
    %c0_i32_0 = arith.constant 0 : i32
    %c0_i32_1 = arith.constant 0 : i32
    return %c0_i32, %c0_i32_0 : i32, i32
  }
  func.func @transform_2(%arg0: i32) -> (i32, i32) {
    %c0_i32 = arith.constant 0 : i32
    %c0_i32_0 = arith.constant 0 : i32
    %c0_i32_1 = arith.constant 0 : i32
    return %c0_i32, %c0_i32_0 : i32, i32
  }
  func.func @transform_3(%arg0: i32) -> (i32, i32) {
    %c0_i32 = arith.constant 0 : i32
    %c0_i32_0 = arith.constant 0 : i32
    %c0_i32_1 = arith.constant 0 : i32
    return %c0_i32, %c0_i32_0 : i32, i32
  }
  func.func @transform_4(%arg0: i32) -> (i32, i32) {
    %c0_i32 = arith.constant 0 : i32
    %c0_i32_0 = arith.constant 0 : i32
    %c0_i32_1 = arith.constant 0 : i32
    return %c0_i32, %c0_i32_0 : i32, i32
  }
  func.func @transform_5(%arg0: i32) -> (i32, i32, i32) {
    %c0_i32 = arith.constant 0 : i32
    %c0_i32_0 = arith.constant 0 : i32
    %c0_i32_1 = arith.constant 0 : i32
    return %arg0, %c0_i32, %c0_i32_0 : i32, i32, i32
  }
}

</mosaic_0001>

<llo_original>
// kernel: down_forward.1
$region0: #{down_forward.1}
  #allocation0 [shape = 'u32[]', space=smem, size = 0x4, offset = 0x4, fixed_abs, tag = 'smem constant byte address 0x4 - core index']
  #allocation1 [shape = 'u32[144,128]{1,0:T(1,128)}', space=vmem, size = 0x12000, scoped, tag = 'internal scratch']
  #allocation2 [shape = 'f32[10,10,4]{2,1,0:T(8,128)}', space=vmem, size = 0x14000, scoped, tag = 'scratch operand']
  #allocation3 [shape = 'f32[10,10,8]{2,1,0:T(8,128)}', space=vmem, size = 0x14000, scoped, tag = 'scratch operand']
  %s0 = inlined_call_operand.vmem [shape: bf16[2,8,2,8,8], index: 0, kind: input, shape index: {}]
  %s1 = inlined_call_operand.vmem [shape: bf16[36,8], index: 1, kind: input, shape index: {}]
  %s2 = inlined_call_operand.vmem [shape: f32[1,8], index: 2, kind: input, shape index: {}]
  %s3 = inlined_call_operand.vmem [shape: bf16[72,8], index: 3, kind: input, shape index: {}]
  %s4 = inlined_call_operand.vmem [shape: f32[1,8], index: 4, kind: input, shape index: {}]
  %s5 = inlined_call_operand.vmem [shape: bf16[2,8,64], index: 5, kind: output, shape index: {}]
  %s6 = sld [smem:[#allocation0]]
  $region53: #{down_forward.1} parent=0
    _
  %s8 = ssub.s32 1, %s6
  %s9 = scalar_select 0, %s8, %s6
  loop: start=0, step=1, limit=4
  $region2: #{down_forward.1} parent=0 // loop_pre_header
    _
  $region3: #{down_forward.1} parent=0 // loop_header
    %s11 = sphi 0, %s15
    %p12 = scmp.ge.s32.totalorder %s11, 4
    %s21 = sphi 0, %s23
    %s24 = sphi 0, %s21
    %s25 = sphi 0, %s24
    %s41 = sphi 0, %s25
    %s45 = sphi 0, %s45
    %s47 = sphi 0, %s45
    %s48 = sphi 0, %s47
    %s62 = sphi 0, %s48
    %s66 = sphi 0, %s66
    %s68 = sphi 0, %s66
    %s69 = sphi 0, %s68
    %s83 = sphi 0, %s69
    %s87 = sphi 0, %s87
    %s89 = sphi 0, %s87
    %s90 = sphi 0, %s89
    %s104 = sphi 0, %s90
    %s108 = sphi 0, %s108
    %s110 = sphi 0, %s108
    %s111 = sphi 0, %s110
    %s125 = sphi 0, %s111
    %s131 = sphi 0, %s133
    %s134 = sphi 0, %s131
    %s135 = sphi 0, %s134
    %s151 = sphi 0, %s135
  $region4: #{down_forward.1} parent=0 // loop_header_branch
    %14 = sbr.rel (%p12) target = $region8
  $region5: #{down_forward.1} parent=0 // loop_body
    %s16 = ssub.s32 %s11, 1
    %s17 = ssub.s32 %s11, 2
    %s18 = sadd.s32 %s11, 1
    %s19 = ssub.s32 %s11, %s18
    %p20 = scmp.eq.s32.totalorder %s19, 0
    %s22 = sadd.s32 %s21, 1
    %s23 = scalar_select %p20, %s21, %s22
    %p26 = pneg %p20
    %p27 = scmp.eq.s32.totalorder %s11, 1
    %p28 = por %p26, %p27
    %p29 = scmp.ne.s32.totalorder %s21, %s24
    %p30 = scmp.eq.s32.totalorder %s11, 0
    %p31 = por %p29, %p30
    %p32 = scmp.ne.s32.totalorder %s21, %s24
    %p33 = scmp.eq.s32.totalorder %s16, 1
    %p34 = por %p32, %p33
    %p35 = scmp.ne.s32.totalorder %s24, %s25
    %p36 = scmp.eq.s32.totalorder %s16, 0
    %p37 = por %p35, %p36
    %p38 = scmp.ne.s32.totalorder %s24, %s25
    %p39 = scmp.eq.s32.totalorder %s17, 1
    %p40 = por %p38, %p39
    %p42 = scmp.ne.s32.totalorder %s25, %s41
    %p43 = scmp.eq.s32.totalorder %s17, 0
    %p44 = por %p42, %p43
    %s46 = sadd.s32 %s45, 1
    %p49 = scmp.eq.s32.totalorder %s11, 1
    %p50 = scmp.ne.s32.totalorder %s45, %s47
    %p51 = scmp.eq.s32.totalorder %s11, 0
    %p52 = por %p50, %p51
    %p53 = scmp.ne.s32.totalorder %s45, %s47
    %p54 = scmp.eq.s32.totalorder %s16, 1
    %p55 = por %p53, %p54
    %p56 = scmp.ne.s32.totalorder %s47, %s48
    %p57 = scmp.eq.s32.totalorder %s16, 0
    %p58 = por %p56, %p57
    %p59 = scmp.ne.s32.totalorder %s47, %s48
    %p60 = scmp.eq.s32.totalorder %s17, 1
    %p61 = por %p59, %p60
    %p63 = scmp.ne.s32.totalorder %s48, %s62
    %p64 = scmp.eq.s32.totalorder %s17, 0
    %p65 = por %p63, %p64
    %s67 = sadd.s32 %s66, 1
    %p70 = scmp.eq.s32.totalorder %s11, 1
    %p71 = scmp.ne.s32.totalorder %s66, %s68
    %p72 = scmp.eq.s32.totalorder %s11, 0
    %p73 = por %p71, %p72
    %p74 = scmp.ne.s32.totalorder %s66, %s68
    %p75 = scmp.eq.s32.totalorder %s16, 1
    %p76 = por %p74, %p75
    %p77 = scmp.ne.s32.totalorder %s68, %s69
    %p78 = scmp.eq.s32.totalorder %s16, 0
    %p79 = por %p77, %p78
    %p80 = scmp.ne.s32.totalorder %s68, %s69
    %p81 = scmp.eq.s32.totalorder %s17, 1
    %p82 = por %p80, %p81
    %p84 = scmp.ne.s32.totalorder %s69, %s83
    %p85 = scmp.eq.s32.totalorder %s17, 0
    %p86 = por %p84, %p85
    %s88 = sadd.s32 %s87, 1
    %p91 = scmp.eq.s32.totalorder %s11, 1
    %p92 = scmp.ne.s32.totalorder %s87, %s89
    %p93 = scmp.eq.s32.totalorder %s11, 0
    %p94 = por %p92, %p93
    %p95 = scmp.ne.s32.totalorder %s87, %s89
    %p96 = scmp.eq.s32.totalorder %s16, 1
    %p97 = por %p95, %p96
    %p98 = scmp.ne.s32.totalorder %s89, %s90
    %p99 = scmp.eq.s32.totalorder %s16, 0
    %p100 = por %p98, %p99
    %p101 = scmp.ne.s32.totalorder %s89, %s90
    %p102 = scmp.eq.s32.totalorder %s17, 1
    %p103 = por %p101, %p102
    %p105 = scmp.ne.s32.totalorder %s90, %s104
    %p106 = scmp.eq.s32.totalorder %s17, 0
    %p107 = por %p105, %p106
    %s109 = sadd.s32 %s108, 1
    %p112 = scmp.eq.s32.totalorder %s11, 1
    %p113 = scmp.ne.s32.totalorder %s108, %s110
    %p114 = scmp.eq.s32.totalorder %s11, 0
    %p115 = por %p113, %p114
    %p116 = scmp.ne.s32.totalorder %s108, %s110
    %p117 = scmp.eq.s32.totalorder %s16, 1
    %p118 = por %p116, %p117
    %p119 = scmp.ne.s32.totalorder %s110, %s111
    %p120 = scmp.eq.s32.totalorder %s16, 0
    %p121 = por %p119, %p120
    %p122 = scmp.ne.s32.totalorder %s110, %s111
    %p123 = scmp.eq.s32.totalorder %s17, 1
    %p124 = por %p122, %p123
    %p126 = scmp.ne.s32.totalorder %s111, %s125
    %p127 = scmp.eq.s32.totalorder %s17, 0
    %p128 = por %p126, %p127
    %s129 = ssub.s32 %s11, %s18
    %p130 = scmp.eq.s32.totalorder %s129, 0
    %s132 = sadd.s32 %s131, 1
    %s133 = scalar_select %p130, %s131, %s132
    %p136 = pneg %p130
    %p137 = scmp.eq.s32.totalorder %s11, 1
    %p138 = por %p136, %p137
    %p139 = scmp.ne.s32.totalorder %s131, %s134
    %p140 = scmp.eq.s32.totalorder %s11, 0
    %p141 = por %p139, %p140
    %p142 = scmp.ne.s32.totalorder %s131, %s134
    %p143 = scmp.eq.s32.totalorder %s16, 1
    %p144 = por %p142, %p143
    %p145 = scmp.ne.s32.totalorder %s134, %s135
    %p146 = scmp.eq.s32.totalorder %s16, 0
    %p147 = por %p145, %p146
    %p148 = scmp.ne.s32.totalorder %s134, %s135
    %p149 = scmp.eq.s32.totalorder %s17, 1
    %p150 = por %p148, %p149
    %p152 = scmp.ne.s32.totalorder %s135, %s151
    %p153 = scmp.eq.s32.totalorder %s17, 0
    %p154 = por %p152, %p153
    %p155 = scmp.le.s32.totalorder 1, %s11
    %p156 = scmp.lt.s32.totalorder %s11, 3
    %p157 = pnand %p155, %p156
    %p158 = pneg %p157
    // Predicated region
    $region9: #{down_forward.1} parent=5 // pred_check
      _
    $region10: #{down_forward.1} parent=5 // pred_check_branch
      %160 = sbr.rel (%p157) target = $region12
    $region11: #{down_forward.1} parent=5 // pred_region
      %s161 = ssub.s32 %s11, 1
      // Predicated region
      $region13: #{down_forward.1} parent=11 // pred_check
        %p162 = pneg %p58
      $region14: #{down_forward.1} parent=11 // pred_check_branch
        %164 = sbr.rel (%p162) target = $region16
      $region15: #{down_forward.1} parent=11 // pred_region
        _
      $region16: #{down_forward.1} parent=11 // pred_fallthru
        _
      // Predicated region
      $region17: #{down_forward.1} parent=11 // pred_check
        %p165 = pneg %p79
      $region18: #{down_forward.1} parent=11 // pred_check_branch
        %167 = sbr.rel (%p165) target = $region20
      $region19: #{down_forward.1} parent=11 // pred_region
        _
      $region20: #{down_forward.1} parent=11 // pred_fallthru
        _
      // Predicated region
      $region21: #{down_forward.1} parent=11 // pred_check
        %p168 = pneg %p100
      $region22: #{down_forward.1} parent=11 // pred_check_branch
        %170 = sbr.rel (%p168) target = $region24
      $region23: #{down_forward.1} parent=11 // pred_region
        _
      $region24: #{down_forward.1} parent=11 // pred_fallthru
        _
      // Predicated region
      $region25: #{down_forward.1} parent=11 // pred_check
        %p171 = pneg %p121
      $region26: #{down_forward.1} parent=11 // pred_check_branch
        %173 = sbr.rel (%p171) target = $region28
      $region27: #{down_forward.1} parent=11 // pred_region
        _
      $region28: #{down_forward.1} parent=11 // pred_fallthru
        _
    $region12: #{down_forward.1} parent=5 // pred_fallthru
      _
    %p174 = scmp.lt.s32.totalorder %s11, 2
    // Predicated region
    $region29: #{down_forward.1} parent=5 // pred_check
      %p175 = pneg %p174
    $region30: #{down_forward.1} parent=5 // pred_check_branch
      %177 = sbr.rel (%p175) target = $region32
    $region31: #{down_forward.1} parent=5 // pred_region
      // Predicated region
      $region33: #{down_forward.1} parent=31 // pred_check
        %p178 = pneg %p31
      $region34: #{down_forward.1} parent=31 // pred_check_branch
        %180 = sbr.rel (%p178) target = $region36
      $region35: #{down_forward.1} parent=31 // pred_region
        %p181 = scmp.lt.s32.totalorder %s11, 1
        %s182 = scalar_select %p181, %s11, 1
        %s183 = smul.addr %s182, 16
        %s184 = smul.addr %s183, 4
        %s185 = scalar_lea.vmem %s0, %s184
      $region36: #{down_forward.1} parent=31 // pred_fallthru
        _
    $region32: #{down_forward.1} parent=5 // pred_fallthru
      _
    %p186 = scmp.le.s32.totalorder 1, %s11
    %p187 = scmp.lt.s32.totalorder %s11, 3
    %p188 = pnand %p186, %p187
    %p189 = pneg %p188
    // Predicated region
    $region37: #{down_forward.1} parent=5 // pred_check
      _
    $region38: #{down_forward.1} parent=5 // pred_check_branch
      %191 = sbr.rel (%p188) target = $region40
    $region39: #{down_forward.1} parent=5 // pred_region
      %s192 = ssub.s32 %s11, 1
      %p193 = scmp.lt.s32.totalorder %s16, 1
      %s194 = scalar_select %p193, %s16, 1
      %s195 = smul.addr %s194, 16
      %s196 = smul.addr %s195, 4
      %s197 = scalar_lea.vmem %s0, %s196
      %p198 = pneg %p37
      %p199 = pneg %p34
      %p200 = pneg %p58
      %p201 = pneg %p55
      %p202 = pneg %p79
      %p203 = pneg %p76
      %p204 = pneg %p100
      %p205 = pneg %p97
      %p206 = pneg %p121
      %p207 = pneg %p118
      %p208 = pneg %p147
      %p209 = pneg %p144
      %p210 = scmp.lt.s32.totalorder %s16, 1
      %s211 = scalar_select %p210, %s16, 1
      %s212 = smul.addr %s211, 4
      %s213 = scalar_lea.vmem %s5, %s212
      %p214 = scmp.lt.s32.totalorder %s16, 1
      %s215 = scalar_select %p214, %s16, 1
      %s216 = smul.addr %s215, 16
      %s217 = smul.addr %s216, 4
      %s218 = scalar_lea.vmem %s0, %s217
      %p219 = scmp.lt.s32.totalorder %s16, 1
      %s220 = scalar_select %p219, %s16, 1
      %s221 = smul.addr %s220, 4
      %s222 = scalar_lea.vmem %s5, %s221
      %vm224 = vcmask 31744
      %225 = vst.msk [vmem:[#allocation2] sm:$0xff] %vm224, 0.0
      %vm226 = vcmask 25600
      %227 = vst.msk [vmem:[#allocation2 + $0x8] sm:$0x3] %vm226, 0.0
      %s228 = scalar_lea.vmem [#allocation2], 144
      %229 = vst.msk [vmem:[%s228] sm:$0xff] %vm224, 0.0
      %230 = vst.msk [vmem:[%s228 + $0x8] sm:$0x3] %vm226, 0.0
      %s231 = scalar_lea.vmem [#allocation2], 16
      %vm232 = vcmask 24576
      %233 = vst.msk [vmem:[%s231] sm:$0x1] %vm232, 0.0
      %234 = vst.msk [vmem:[%s231 + $0x10] sm:$0x1] %vm232, 0.0
      %235 = vst.msk [vmem:[%s231 + $0x20] sm:$0x1] %vm232, 0.0
      %236 = vst.msk [vmem:[%s231 + $0x30] sm:$0x1] %vm232, 0.0
      %237 = vst.msk [vmem:[%s231 + $0x40] sm:$0x1] %vm232, 0.0
      %238 = vst.msk [vmem:[%s231 + $0x50] sm:$0x1] %vm232, 0.0
      %239 = vst.msk [vmem:[%s231 + $0x60] sm:$0x1] %vm232, 0.0
      %240 = vst.msk [vmem:[%s231 + $0x70] sm:$0x1] %vm232, 0.0
      %241 = vst.msk [vmem:[%s231 + $0x9] sm:$0x1] %vm232, 0.0
      %242 = vst.msk [vmem:[%s231 + $0x19] sm:$0x1] %vm232, 0.0
      %243 = vst.msk [vmem:[%s231 + $0x29] sm:$0x1] %vm232, 0.0
      %244 = vst.msk [vmem:[%s231 + $0x39] sm:$0x1] %vm232, 0.0
      %245 = vst.msk [vmem:[%s231 + $0x49] sm:$0x1] %vm232, 0.0
      %246 = vst.msk [vmem:[%s231 + $0x59] sm:$0x1] %vm232, 0.0
      %247 = vst.msk [vmem:[%s231 + $0x69] sm:$0x1] %vm232, 0.0
      %248 = vst.msk [vmem:[%s231 + $0x79] sm:$0x1] %vm232, 0.0
      %vm249 = vcmask 64512
      %250 = vst.msk [vmem:[#allocation3] sm:$0xff] %vm249, 0.0
      %vm251 = vcmask 58368
      %252 = vst.msk [vmem:[#allocation3 + $0x8] sm:$0x3] %vm251, 0.0
      %s253 = scalar_lea.vmem [#allocation3], 144
      %254 = vst.msk [vmem:[%s253] sm:$0xff] %vm249, 0.0
      %255 = vst.msk [vmem:[%s253 + $0x8] sm:$0x3] %vm251, 0.0
      %s256 = scalar_lea.vmem [#allocation3], 16
      %vm257 = vcmask 57344
      %258 = vst.msk [vmem:[%s256] sm:$0x1] %vm257, 0.0
      %259 = vst.msk [vmem:[%s256 + $0x10] sm:$0x1] %vm257, 0.0
      %260 = vst.msk [vmem:[%s256 + $0x20] sm:$0x1] %vm257, 0.0
      %261 = vst.msk [vmem:[%s256 + $0x30] sm:$0x1] %vm257, 0.0
      %262 = vst.msk [vmem:[%s256 + $0x40] sm:$0x1] %vm257, 0.0
      %263 = vst.msk [vmem:[%s256 + $0x50] sm:$0x1] %vm257, 0.0
      %264 = vst.msk [vmem:[%s256 + $0x60] sm:$0x1] %vm257, 0.0
      %265 = vst.msk [vmem:[%s256 + $0x70] sm:$0x1] %vm257, 0.0
      %266 = vst.msk [vmem:[%s256 + $0x9] sm:$0x1] %vm257, 0.0
      %267 = vst.msk [vmem:[%s256 + $0x19] sm:$0x1] %vm257, 0.0
      %268 = vst.msk [vmem:[%s256 + $0x29] sm:$0x1] %vm257, 0.0
      %269 = vst.msk [vmem:[%s256 + $0x39] sm:$0x1] %vm257, 0.0
      %270 = vst.msk [vmem:[%s256 + $0x49] sm:$0x1] %vm257, 0.0
      %271 = vst.msk [vmem:[%s256 + $0x59] sm:$0x1] %vm257, 0.0
      %272 = vst.msk [vmem:[%s256 + $0x69] sm:$0x1] %vm257, 0.0
      %273 = vst.msk [vmem:[%s256 + $0x79] sm:$0x1] %vm257, 0.0
      %v274 = vld [vmem:[%s218] sm:$0xf]
      %v275 = vld [vmem:[%s218 + $0x8] sm:$0xf]
      %v276 = vld [vmem:[%s218 + $0x10] sm:$0xf]
      %v277 = vld [vmem:[%s218 + $0x18] sm:$0xf]
      %v278 = vld [vmem:[%s218 + $0x20] sm:$0xf]
      %v279 = vld [vmem:[%s218 + $0x28] sm:$0xf]
      %v280 = vld [vmem:[%s218 + $0x30] sm:$0xf]
      %v281 = vld [vmem:[%s218 + $0x38] sm:$0xf]
      %s282 = scalar_lea.vmem %s218, 4
      %v283 = vld [vmem:[%s282] sm:$0xf]
      %v284 = vld [vmem:[%s282 + $0x8] sm:$0xf]
      %v285 = vld [vmem:[%s282 + $0x10] sm:$0xf]
      %v286 = vld [vmem:[%s282 + $0x18] sm:$0xf]
      %v287 = vld [vmem:[%s282 + $0x20] sm:$0xf]
      %v288 = vld [vmem:[%s282 + $0x28] sm:$0xf]
      %v289 = vld [vmem:[%s282 + $0x30] sm:$0xf]
      %v290 = vld [vmem:[%s282 + $0x38] sm:$0xf]
      %v291 = vmax.bf16 %v274, %v283
      %v292 = vmax.bf16 %v275, %v284
      %v293 = vmax.bf16 %v276, %v285
      %v294 = vmax.bf16 %v277, %v286
      %v295 = vmax.bf16 %v278, %v287
      %v296 = vmax.bf16 %v279, %v288
      %v297 = vmax.bf16 %v280, %v289
      %v298 = vmax.bf16 %v281, %v290
      %307 = vrot.lane.b32.xlu0 %v291, 124
      %v308 = vpop.permute.xlu0 %307
      %309 = vrot.lane.b32.xlu0 %v292, 124
      %v310 = vpop.permute.xlu0 %309
      %311 = vrot.lane.b32.xlu0 %v293, 124
      %v312 = vpop.permute.xlu0 %311
      %313 = vrot.lane.b32.xlu0 %v294, 124
      %v314 = vpop.permute.xlu0 %313
      %315 = vrot.lane.b32.xlu0 %v295, 124
      %v316 = vpop.permute.xlu0 %315
      %317 = vrot.lane.b32.xlu0 %v296, 124
      %v318 = vpop.permute.xlu0 %317
      %319 = vrot.lane.b32.xlu0 %v297, 124
      %v320 = vpop.permute.xlu0 %319
      %321 = vrot.lane.b32.xlu0 %v298, 124
      %v322 = vpop.permute.xlu0 %321
      %v331 = vmax.bf16 %v291, %v308
      %v332 = vmax.bf16 %v292, %v310
      %v333 = vmax.bf16 %v293, %v312
      %v334 = vmax.bf16 %v294, %v314
      %v335 = vmax.bf16 %v295, %v316
      %v336 = vmax.bf16 %v296, %v318
      %v337 = vmax.bf16 %v297, %v320
      %v338 = vmax.bf16 %v298, %v322
      %v339 = vunpack.c.l.bf16 %v331
      %v340 = vunpack.c.l.bf16 %v332
      %v341 = vunpack.c.l.bf16 %v333
      %v342 = vunpack.c.l.bf16 %v334
      %v343 = vunpack.c.l.bf16 %v335
      %v344 = vunpack.c.l.bf16 %v336
      %v345 = vunpack.c.l.bf16 %v337
      %v346 = vunpack.c.l.bf16 %v338
      %347 = vst.msk [vmem:[%s231 + $0x1] sm:$0xff] %vm224, %v339
      %348 = vst.msk [vmem:[%s231 + $0x11] sm:$0xff] %vm224, %v340
      %349 = vst.msk [vmem:[%s231 + $0x21] sm:$0xff] %vm224, %v341
      %350 = vst.msk [vmem:[%s231 + $0x31] sm:$0xff] %vm224, %v342
      %351 = vst.msk [vmem:[%s231 + $0x41] sm:$0xff] %vm224, %v343
      %352 = vst.msk [vmem:[%s231 + $0x51] sm:$0xff] %vm224, %v344
      %353 = vst.msk [vmem:[%s231 + $0x61] sm:$0xff] %vm224, %v345
      %354 = vst.msk [vmem:[%s231 + $0x71] sm:$0xff] %vm224, %v346
      %v355 = vld [vmem:[#allocation2] sm:$0xff]
      %v356 = vld [vmem:[#allocation2 + $0x10] sm:$0xff]
      %v357 = vld [vmem:[#allocation2 + $0x20] sm:$0xff]
      %v358 = vld [vmem:[#allocation2 + $0x30] sm:$0xff]
      %v359 = vld [vmem:[#allocation2 + $0x40] sm:$0xff]
      %v360 = vld [vmem:[#allocation2 + $0x50] sm:$0xff]
      %v361 = vld [vmem:[#allocation2 + $0x60] sm:$0xff]
      %v362 = vld [vmem:[#allocation2 + $0x70] sm:$0xff]
      %v363 = vld [vmem:[#allocation2 + $0x1] sm:$0xff]
      %v364 = vld [vmem:[#allocation2 + $0x11] sm:$0xff]
      %v365 = vld [vmem:[#allocation2 + $0x21] sm:$0xff]
      %v366 = vld [vmem:[#allocation2 + $0x31] sm:$0xff]
      %v367 = vld [vmem:[#allocation2 + $0x41] sm:$0xff]
      %v368 = vld [vmem:[#allocation2 + $0x51] sm:$0xff]
      %v369 = vld [vmem:[#allocation2 + $0x61] sm:$0xff]
      %v370 = vld [vmem:[#allocation2 + $0x71] sm:$0xff]
      %v371 = vld [vmem:[#allocation2 + $0x2] sm:$0xff]
      %v372 = vld [vmem:[#allocation2 + $0x12] sm:$0xff]
      %v373 = vld [vmem:[#allocation2 + $0x22] sm:$0xff]
      %v374 = vld [vmem:[#allocation2 + $0x32] sm:$0xff]
      %v375 = vld [vmem:[#allocation2 + $0x42] sm:$0xff]
      %v376 = vld [vmem:[#allocation2 + $0x52] sm:$0xff]
      %v377 = vld [vmem:[#allocation2 + $0x62] sm:$0xff]
      %v378 = vld [vmem:[#allocation2 + $0x72] sm:$0xff]
      %v379 = vld [vmem:[%s231] sm:$0xff]
      %v380 = vld [vmem:[%s231 + $0x10] sm:$0xff]
      %v381 = vld [vmem:[%s231 + $0x20] sm:$0xff]
      %v382 = vld [vmem:[%s231 + $0x30] sm:$0xff]
      %v383 = vld [vmem:[%s231 + $0x40] sm:$0xff]
      %v384 = vld [vmem:[%s231 + $0x50] sm:$0xff]
      %v385 = vld [vmem:[%s231 + $0x60] sm:$0xff]
      %v386 = vld [vmem:[%s231 + $0x70] sm:$0xff]
      %v387 = vld [vmem:[%s231 + $0x1] sm:$0xff]
      %v388 = vld [vmem:[%s231 + $0x11] sm:$0xff]
      %v389 = vld [vmem:[%s231 + $0x21] sm:$0xff]
      %v390 = vld [vmem:[%s231 + $0x31] sm:$0xff]
      %v391 = vld [vmem:[%s231 + $0x41] sm:$0xff]
      %v392 = vld [vmem:[%s231 + $0x51] sm:$0xff]
      %v393 = vld [vmem:[%s231 + $0x61] sm:$0xff]
      %v394 = vld [vmem:[%s231 + $0x71] sm:$0xff]
      %v395 = vld [vmem:[%s231 + $0x2] sm:$0xff]
      %v396 = vld [vmem:[%s231 + $0x12] sm:$0xff]
      %v397 = vld [vmem:[%s231 + $0x22] sm:$0xff]
      %v398 = vld [vmem:[%s231 + $0x32] sm:$0xff]
      %v399 = vld [vmem:[%s231 + $0x42] sm:$0xff]
      %v400 = vld [vmem:[%s231 + $0x52] sm:$0xff]
      %v401 = vld [vmem:[%s231 + $0x62] sm:$0xff]
      %v402 = vld [vmem:[%s231 + $0x72] sm:$0xff]
      %s403 = scalar_lea.vmem [#allocation2], 32
      %v404 = vld [vmem:[%s403] sm:$0xff]
      %v405 = vld [vmem:[%s403 + $0x10] sm:$0xff]
      %v406 = vld [vmem:[%s403 + $0x20] sm:$0xff]
      %v407 = vld [vmem:[%s403 + $0x30] sm:$0xff]
      %v408 = vld [vmem:[%s403 + $0x40] sm:$0xff]
      %v409 = vld [vmem:[%s403 + $0x50] sm:$0xff]
      %v410 = vld [vmem:[%s403 + $0x60] sm:$0xff]
      %v411 = vld [vmem:[%s403 + $0x70] sm:$0xff]
      %v412 = vld [vmem:[%s403 + $0x1] sm:$0xff]
      %v413 = vld [vmem:[%s403 + $0x11] sm:$0xff]
      %v414 = vld [vmem:[%s403 + $0x21] sm:$0xff]
      %v415 = vld [vmem:[%s403 + $0x31] sm:$0xff]
      %v416 = vld [vmem:[%s403 + $0x41] sm:$0xff]
      %v417 = vld [vmem:[%s403 + $0x51] sm:$0xff]
      %v418 = vld [vmem:[%s403 + $0x61] sm:$0xff]
      %v419 = vld [vmem:[%s403 + $0x71] sm:$0xff]
      %v420 = vld [vmem:[%s403 + $0x2] sm:$0xff]
      %v421 = vld [vmem:[%s403 + $0x12] sm:$0xff]
      %v422 = vld [vmem:[%s403 + $0x22] sm:$0xff]
      %v423 = vld [vmem:[%s403 + $0x32] sm:$0xff]
      %v424 = vld [vmem:[%s403 + $0x42] sm:$0xff]
      %v425 = vld [vmem:[%s403 + $0x52] sm:$0xff]
      %v426 = vld [vmem:[%s403 + $0x62] sm:$0xff]
      %v427 = vld [vmem:[%s403 + $0x72] sm:$0xff]
      %436 = vrot.lane.b32.xlu0 %v363, 4
      %v437 = vpop.permute.xlu0 %436
      %438 = vrot.lane.b32.xlu0 %v364, 4
      %v439 = vpop.permute.xlu0 %438
      %440 = vrot.lane.b32.xlu0 %v365, 4
      %v441 = vpop.permute.xlu0 %440
      %442 = vrot.lane.b32.xlu0 %v366, 4
      %v443 = vpop.permute.xlu0 %442
      %444 = vrot.lane.b32.xlu0 %v367, 4
      %v445 = vpop.permute.xlu0 %444
      %446 = vrot.lane.b32.xlu0 %v368, 4
      %v447 = vpop.permute.xlu0 %446
      %448 = vrot.lane.b32.xlu0 %v369, 4
      %v449 = vpop.permute.xlu0 %448
      %450 = vrot.lane.b32.xlu0 %v370, 4
      %v451 = vpop.permute.xlu0 %450
      %468 = vrot.lane.b32.xlu0 %v371, 8
      %v469 = vpop.permute.xlu0 %468
      %470 = vrot.lane.b32.xlu0 %v372, 8
      %v471 = vpop.permute.xlu0 %470
      %472 = vrot.lane.b32.xlu0 %v373, 8
      %v473 = vpop.permute.xlu0 %472
      %474 = vrot.lane.b32.xlu0 %v374, 8
      %v475 = vpop.permute.xlu0 %474
      %476 = vrot.lane.b32.xlu0 %v375, 8
      %v477 = vpop.permute.xlu0 %476
      %478 = vrot.lane.b32.xlu0 %v376, 8
      %v479 = vpop.permute.xlu0 %478
      %480 = vrot.lane.b32.xlu0 %v377, 8
      %v481 = vpop.permute.xlu0 %480
      %482 = vrot.lane.b32.xlu0 %v378, 8
      %v483 = vpop.permute.xlu0 %482
      %500 = vrot.lane.b32.xlu0 %v379, 12
      %v501 = vpop.permute.xlu0 %500
      %502 = vrot.lane.b32.xlu0 %v380, 12
      %v503 = vpop.permute.xlu0 %502
      %504 = vrot.lane.b32.xlu0 %v381, 12
      %v505 = vpop.permute.xlu0 %504
      %506 = vrot.lane.b32.xlu0 %v382, 12
      %v507 = vpop.permute.xlu0 %506
      %508 = vrot.lane.b32.xlu0 %v383, 12
      %v509 = vpop.permute.xlu0 %508
      %510 = vrot.lane.b32.xlu0 %v384, 12
      %v511 = vpop.permute.xlu0 %510
      %512 = vrot.lane.b32.xlu0 %v385, 12
      %v513 = vpop.permute.xlu0 %512
      %514 = vrot.lane.b32.xlu0 %v386, 12
      %v515 = vpop.permute.xlu0 %514
      %532 = vrot.lane.b32.xlu0 %v387, 16
      %v533 = vpop.permute.xlu0 %532
      %534 = vrot.lane.b32.xlu0 %v388, 16
      %v535 = vpop.permute.xlu0 %534
      %536 = vrot.lane.b32.xlu0 %v389, 16
      %v537 = vpop.permute.xlu0 %536
      %538 = vrot.lane.b32.xlu0 %v390, 16
      %v539 = vpop.permute.xlu0 %538
      %540 = vrot.lane.b32.xlu0 %v391, 16
      %v541 = vpop.permute.xlu0 %540
      %542 = vrot.lane.b32.xlu0 %v392, 16
      %v543 = vpop.permute.xlu0 %542
      %544 = vrot.lane.b32.xlu0 %v393, 16
      %v545 = vpop.permute.xlu0 %544
      %546 = vrot.lane.b32.xlu0 %v394, 16
      %v547 = vpop.permute.xlu0 %546
      %564 = vrot.lane.b32.xlu0 %v395, 20
      %v565 = vpop.permute.xlu0 %564
      %566 = vrot.lane.b32.xlu0 %v396, 20
      %v567 = vpop.permute.xlu0 %566
      %568 = vrot.lane.b32.xlu0 %v397, 20
      %v569 = vpop.permute.xlu0 %568
      %570 = vrot.lane.b32.xlu0 %v398, 20
      %v571 = vpop.permute.xlu0 %570
      %572 = vrot.lane.b32.xlu0 %v399, 20
      %v573 = vpop.permute.xlu0 %572
      %574 = vrot.lane.b32.xlu0 %v400, 20
      %v575 = vpop.permute.xlu0 %574
      %576 = vrot.lane.b32.xlu0 %v401, 20
      %v577 = vpop.permute.xlu0 %576
      %578 = vrot.lane.b32.xlu0 %v402, 20
      %v579 = vpop.permute.xlu0 %578
      %596 = vrot.lane.b32.xlu0 %v404, 24
      %v597 = vpop.permute.xlu0 %596
      %598 = vrot.lane.b32.xlu0 %v405, 24
      %v599 = vpop.permute.xlu0 %598
      %600 = vrot.lane.b32.xlu0 %v406, 24
      %v601 = vpop.permute.xlu0 %600
      %602 = vrot.lane.b32.xlu0 %v407, 24
      %v603 = vpop.permute.xlu0 %602
      %604 = vrot.lane.b32.xlu0 %v408, 24
      %v605 = vpop.permute.xlu0 %604
      %606 = vrot.lane.b32.xlu0 %v409, 24
      %v607 = vpop.permute.xlu0 %606
      %608 = vrot.lane.b32.xlu0 %v410, 24
      %v609 = vpop.permute.xlu0 %608
      %610 = vrot.lane.b32.xlu0 %v411, 24
      %v611 = vpop.permute.xlu0 %610
      %628 = vrot.lane.b32.xlu0 %v412, 28
      %v629 = vpop.permute.xlu0 %628
      %630 = vrot.lane.b32.xlu0 %v413, 28
      %v631 = vpop.permute.xlu0 %630
      %632 = vrot.lane.b32.xlu0 %v414, 28
      %v633 = vpop.permute.xlu0 %632
      %634 = vrot.lane.b32.xlu0 %v415, 28
      %v635 = vpop.permute.xlu0 %634
      %636 = vrot.lane.b32.xlu0 %v416, 28
      %v637 = vpop.permute.xlu0 %636
      %638 = vrot.lane.b32.xlu0 %v417, 28
      %v639 = vpop.permute.xlu0 %638
      %640 = vrot.lane.b32.xlu0 %v418, 28
      %v641 = vpop.permute.xlu0 %640
      %642 = vrot.lane.b32.xlu0 %v419, 28
      %v643 = vpop.permute.xlu0 %642
      %660 = vrot.lane.b32.xlu0 %v420, 32
      %v661 = vpop.permute.xlu0 %660
      %662 = vrot.lane.b32.xlu0 %v421, 32
      %v663 = vpop.permute.xlu0 %662
      %664 = vrot.lane.b32.xlu0 %v422, 32
      %v665 = vpop.permute.xlu0 %664
      %666 = vrot.lane.b32.xlu0 %v423, 32
      %v667 = vpop.permute.xlu0 %666
      %668 = vrot.lane.b32.xlu0 %v424, 32
      %v669 = vpop.permute.xlu0 %668
      %670 = vrot.lane.b32.xlu0 %v425, 32
      %v671 = vpop.permute.xlu0 %670
      %672 = vrot.lane.b32.xlu0 %v426, 32
      %v673 = vpop.permute.xlu0 %672
      %674 = vrot.lane.b32.xlu0 %v427, 32
      %v675 = vpop.permute.xlu0 %674
      %v684 = vsel %vm224, %v355, %v437
      %v685 = vsel %vm224, %v356, %v439
      %v686 = vsel %vm224, %v357, %v441
      %v687 = vsel %vm224, %v358, %v443
      %v688 = vsel %vm224, %v359, %v445
      %v689 = vsel %vm224, %v360, %v447
      %v690 = vsel %vm224, %v361, %v449
      %v691 = vsel %vm224, %v362, %v451
      %v692 = vsel %vm249, %v684, %v469
      %v693 = vsel %vm249, %v685, %v471
      %v694 = vsel %vm249, %v686, %v473
      %v695 = vsel %vm249, %v687, %v475
      %v696 = vsel %vm249, %v688, %v477
      %v697 = vsel %vm249, %v689, %v479
      %v698 = vsel %vm249, %v690, %v481
      %v699 = vsel %vm249, %v691, %v483
      %vm700 = vcmask 97280
      %v701 = vsel %vm700, %v692, %v501
      %v702 = vsel %vm700, %v693, %v503
      %v703 = vsel %vm700, %v694, %v505
      %v704 = vsel %vm700, %v695, %v507
      %v705 = vsel %vm700, %v696, %v509
      %v706 = vsel %vm700, %v697, %v511
      %v707 = vsel %vm700, %v698, %v513
      %v708 = vsel %vm700, %v699, %v515
      %vm709 = vcmask 130048
      %v710 = vsel %vm709, %v701, %v533
      %v711 = vsel %vm709, %v702, %v535
      %v712 = vsel %vm709, %v703, %v537
      %v713 = vsel %vm709, %v704, %v539
      %v714 = vsel %vm709, %v705, %v541
      %v715 = vsel %vm709, %v706, %v543
      %v716 = vsel %vm709, %v707, %v545
      %v717 = vsel %vm709, %v708, %v547
      %vm718 = vcmask 162816
      %v719 = vsel %vm718, %v710, %v565
      %v720 = vsel %vm718, %v711, %v567
      %v721 = vsel %vm718, %v712, %v569
      %v722 = vsel %vm718, %v713, %v571
      %v723 = vsel %vm718, %v714, %v573
      %v724 = vsel %vm718, %v715, %v575
      %v725 = vsel %vm718, %v716, %v577
      %v726 = vsel %vm718, %v717, %v579
      %vm727 = vcmask 195584
      %v728 = vsel %vm727, %v719, %v597
      %v729 = vsel %vm727, %v720, %v599
      %v730 = vsel %vm727, %v721, %v601
      %v731 = vsel %vm727, %v722, %v603
      %v732 = vsel %vm727, %v723, %v605
      %v733 = vsel %vm727, %v724, %v607
      %v734 = vsel %vm727, %v725, %v609
      %v735 = vsel %vm727, %v726, %v611
      %vm736 = vcmask 228352
      %v737 = vsel %vm736, %v728, %v629
      %v738 = vsel %vm736, %v729, %v631
      %v739 = vsel %vm736, %v730, %v633
      %v740 = vsel %vm736, %v731, %v635
      %v741 = vsel %vm736, %v732, %v637
      %v742 = vsel %vm736, %v733, %v639
      %v743 = vsel %vm736, %v734, %v641
      %v744 = vsel %vm736, %v735, %v643
      %vm745 = vcmask 261120
      %v746 = vsel %vm745, %v737, %v661
      %v747 = vsel %vm745, %v738, %v663
      %v748 = vsel %vm745, %v739, %v665
      %v749 = vsel %vm745, %v740, %v667
      %v750 = vsel %vm745, %v741, %v669
      %v751 = vsel %vm745, %v742, %v671
      %v752 = vsel %vm745, %v743, %v673
      %v753 = vsel %vm745, %v744, %v675
      %v754 = vpack.c.bf16 %v747, %v746
      %v755 = vpack.c.bf16 %v749, %v748
      %v756 = vpack.c.bf16 %v751, %v750
      %v757 = vpack.c.bf16 %v753, %v752
      %v758 = vld [vmem:[%s1] sm:$0xf]
      %v759 = vld [vmem:[%s1 + $0x4] sm:$0xf]
      %v760 = vld [vmem:[%s1 + $0x8] sm:$0xf]
      %v761 = vld [vmem:[%s1 + $0xc] sm:$0xf]
      %v762 = vld [vmem:[%s1 + $0x10] sm:$0x3]
      %v763 = vld [vmem:[%s2] sm:$0x1]
      %v765 = vlaneseq
      %v766 = vshrl.u32 %v765, 7
      %v767 = vsub.s32 0, %v766
      %v768 = vrot.slane %v763, %v767
      %v775 = vunpack.c.l.b16 %v758
      %v776 = vunpack.c.l.b16 %v759
      %v777 = vunpack.c.l.b16 %v760
      %v778 = vunpack.c.l.b16 %v761
      %v779 = vunpack.c.l.b16 %v762
      %v780 = vpack.c.b16 %v776, %v775
      %v781 = vpack.c.b16 %v778, %v777
      %v782 = vpack.c.b16 %v779, %v779
      %vm785 = vcmask 293888
      %v787 = vsel %vm785, %v754, 0
      %v790 = vsel %vm785, %v755, 0
      %v793 = vsel %vm785, %v756, 0
      %v796 = vsel %vm785, %v757, 0
      %vm798 = vcmask 1041408
      %v800 = vsel %vm798, %v782, 0
      %802 = vmatprep.subr.bf16.mxu0 0
      %803 = vmatpush1.bf16.msra.mxu0 %v780
      %804 = vmatprep.subr.bf16.mxu0 0
      %805 = vmatpush1.bf16.msra.mxu0 %v781
      %806 = vmatprep.subr.bf16.mxu0 0
      %807 = vmatpush1.bf16.msra.mxu0 %v800
      %808 = vmatprep.subr.bf16.mxu0 0
      %809 = vmatpush1.bf16.msra.mxu0 0
      %810 = vmatprep.subr.bf16.mxu0 0
      %811 = vmatpush1.bf16.msra.mxu0 0
      %812 = vmatprep.subr.bf16.mxu0 0
      %813 = vmatpush1.bf16.msra.mxu0 0
      %814 = vmatprep.subr.bf16.mxu0 0
      %815 = vmatpush1.bf16.msra.mxu0 0
      %816 = vmatprep.subr.bf16.mxu0 0
      %817 = vmatpush1.bf16.msra.mxu0 0
      %818 = vmatprep.subr.bf16.mxu0 0
      %819 = vmatpush1.bf16.msra.mxu0 0
      %820 = vmatprep.subr.bf16.mxu0 0
      %821 = vmatpush1.bf16.msra.mxu0 0
      %822 = vmatprep.subr.bf16.mxu0 0
      %823 = vmatpush1.bf16.msra.mxu0 0
      %824 = vmatprep.subr.bf16.mxu0 0
      %825 = vmatpush1.bf16.msra.mxu0 0
      %826 = vmatprep.subr.bf16.mxu0 0
      %827 = vmatpush1.bf16.msra.mxu0 0
      %828 = vmatprep.subr.bf16.mxu0 0
      %829 = vmatpush1.bf16.msra.mxu0 0
      %830 = vmatprep.subr.bf16.mxu0 0
      %831 = vmatpush1.bf16.msra.mxu0 0
      %832 = vmatprep.subr.bf16.mxu0 0
      %833 = vmatpush1.bf16.msra.mxu0 0
      %834 = vmatprep.mubr.bf16.mxu0 0
      %835 = vmatmul.mubr.bf16.gmra.mrb[0].mxu0 %v787
      %v836 = vpop.f32.mrb[0].mxu0
      %v837 = vadd.f32 %v768, %v836
      %v838 = vpop.f32.mrb[0].mxu0
      %v839 = vpop.f32.mrb[0].mxu0
      %v840 = vadd.f32 %v768, %v839
      %v841 = vpop.f32.mrb[0].mxu0
      %842 = vmatprep.mubr.bf16.mxu0 0
      %843 = vmatmul.mubr.bf16.gmra.mrb[0].mxu0 %v790
      %v844 = vpop.f32.mrb[0].mxu0
      %v845 = vadd.f32 %v768, %v844
      %v846 = vpop.f32.mrb[0].mxu0
      %v847 = vpop.f32.mrb[0].mxu0
      %v848 = vadd.f32 %v768, %v847
      %v849 = vpop.f32.mrb[0].mxu0
      %850 = vmatprep.mubr.bf16.mxu0 0
      %851 = vmatmul.mubr.bf16.gmra.mrb[0].mxu0 %v793
      %v852 = vpop.f32.mrb[0].mxu0
      %v853 = vadd.f32 %v768, %v852
      %v854 = vpop.f32.mrb[0].mxu0
      %v855 = vpop.f32.mrb[0].mxu0
      %v856 = vadd.f32 %v768, %v855
      %v857 = vpop.f32.mrb[0].mxu0
      %858 = vmatprep.mubr.bf16.mxu0 0
      %859 = vmatmul.mubr.bf16.gmra.mrb[0].mxu0 %v796
      %v860 = vpop.f32.mrb[0].mxu0
      %v861 = vadd.f32 %v768, %v860
      %v862 = vpop.f32.mrb[0].mxu0
      %v863 = vpop.f32.mrb[0].mxu0
      %v864 = vadd.f32 %v768, %v863
      %v865 = vpop.f32.mrb[0].mxu0
      %866 = vdwg.mxu0
      %v867 = vmax.f32 %v837, 0.0
      %v868 = vmax.f32 %v840, 0.0
      %v869 = vmax.f32 %v845, 0.0
      %v870 = vmax.f32 %v848, 0.0
      %v871 = vmax.f32 %v853, 0.0
      %v872 = vmax.f32 %v856, 0.0
      %v873 = vmax.f32 %v861, 0.0
      %v874 = vmax.f32 %v864, 0.0
      %875 = vst.msk [vmem:[%s256 + $0x1] sm:$0xff] %vm249, %v867
      %876 = vst.msk [vmem:[%s256 + $0x11] sm:$0xff] %vm249, %v868
      %877 = vst.msk [vmem:[%s256 + $0x21] sm:$0xff] %vm249, %v869
      %878 = vst.msk [vmem:[%s256 + $0x31] sm:$0xff] %vm249, %v870
      %879 = vst.msk [vmem:[%s256 + $0x41] sm:$0xff] %vm249, %v871
      %880 = vst.msk [vmem:[%s256 + $0x51] sm:$0xff] %vm249, %v872
      %881 = vst.msk [vmem:[%s256 + $0x61] sm:$0xff] %vm249, %v873
      %882 = vst.msk [vmem:[%s256 + $0x71] sm:$0xff] %vm249, %v874
      %v883 = vld [vmem:[#allocation3] sm:$0xff]
      %v884 = vld [vmem:[#allocation3 + $0x10] sm:$0xff]
      %v885 = vld [vmem:[#allocation3 + $0x20] sm:$0xff]
      %v886 = vld [vmem:[#allocation3 + $0x30] sm:$0xff]
      %v887 = vld [vmem:[#allocation3 + $0x40] sm:$0xff]
      %v888 = vld [vmem:[#allocation3 + $0x50] sm:$0xff]
      %v889 = vld [vmem:[#allocation3 + $0x60] sm:$0xff]
      %v890 = vld [vmem:[#allocation3 + $0x70] sm:$0xff]
      %v891 = vld [vmem:[#allocation3 + $0x1] sm:$0xff]
      %v892 = vld [vmem:[#allocation3 + $0x11] sm:$0xff]
      %v893 = vld [vmem:[#allocation3 + $0x21] sm:$0xff]
      %v894 = vld [vmem:[#allocation3 + $0x31] sm:$0xff]
      %v895 = vld [vmem:[#allocation3 + $0x41] sm:$0xff]
      %v896 = vld [vmem:[#allocation3 + $0x51] sm:$0xff]
      %v897 = vld [vmem:[#allocation3 + $0x61] sm:$0xff]
      %v898 = vld [vmem:[#allocation3 + $0x71] sm:$0xff]
      %v899 = vld [vmem:[#allocation3 + $0x2] sm:$0xff]
      %v900 = vld [vmem:[#allocation3 + $0x12] sm:$0xff]
      %v901 = vld [vmem:[#allocation3 + $0x22] sm:$0xff]
      %v902 = vld [vmem:[#allocation3 + $0x32] sm:$0xff]
      %v903 = vld [vmem:[#allocation3 + $0x42] sm:$0xff]
      %v904 = vld [vmem:[#allocation3 + $0x52] sm:$0xff]
      %v905 = vld [vmem:[#allocation3 + $0x62] sm:$0xff]
      %v906 = vld [vmem:[#allocation3 + $0x72] sm:$0xff]
      %v907 = vld [vmem:[%s256] sm:$0xff]
      %v908 = vld [vmem:[%s256 + $0x10] sm:$0xff]
      %v909 = vld [vmem:[%s256 + $0x20] sm:$0xff]
      %v910 = vld [vmem:[%s256 + $0x30] sm:$0xff]
      %v911 = vld [vmem:[%s256 + $0x40] sm:$0xff]
      %v912 = vld [vmem:[%s256 + $0x50] sm:$0xff]
      %v913 = vld [vmem:[%s256 + $0x60] sm:$0xff]
      %v914 = vld [vmem:[%s256 + $0x70] sm:$0xff]
      %v915 = vld [vmem:[%s256 + $0x1] sm:$0xff]
      %v916 = vld [vmem:[%s256 + $0x11] sm:$0xff]
      %v917 = vld [vmem:[%s256 + $0x21] sm:$0xff]
      %v918 = vld [vmem:[%s256 + $0x31] sm:$0xff]
      %v919 = vld [vmem:[%s256 + $0x41] sm:$0xff]
      %v920 = vld [vmem:[%s256 + $0x51] sm:$0xff]
      %v921 = vld [vmem:[%s256 + $0x61] sm:$0xff]
      %v922 = vld [vmem:[%s256 + $0x71] sm:$0xff]
      %v923 = vld [vmem:[%s256 + $0x2] sm:$0xff]
      %v924 = vld [vmem:[%s256 + $0x12] sm:$0xff]
      %v925 = vld [vmem:[%s256 + $0x22] sm:$0xff]
      %v926 = vld [vmem:[%s256 + $0x32] sm:$0xff]
      %v927 = vld [vmem:[%s256 + $0x42] sm:$0xff]
      %v928 = vld [vmem:[%s256 + $0x52] sm:$0xff]
      %v929 = vld [vmem:[%s256 + $0x62] sm:$0xff]
      %v930 = vld [vmem:[%s256 + $0x72] sm:$0xff]
      %s931 = scalar_lea.vmem [#allocation3], 32
      %v932 = vld [vmem:[%s931] sm:$0xff]
      %v933 = vld [vmem:[%s931 + $0x10] sm:$0xff]
      %v934 = vld [vmem:[%s931 + $0x20] sm:$0xff]
      %v935 = vld [vmem:[%s931 + $0x30] sm:$0xff]
      %v936 = vld [vmem:[%s931 + $0x40] sm:$0xff]
      %v937 = vld [vmem:[%s931 + $0x50] sm:$0xff]
      %v938 = vld [vmem:[%s931 + $0x60] sm:$0xff]
      %v939 = vld [vmem:[%s931 + $0x70] sm:$0xff]
      %v940 = vld [vmem:[%s931 + $0x1] sm:$0xff]
      %v941 = vld [vmem:[%s931 + $0x11] sm:$0xff]
      %v942 = vld [vmem:[%s931 + $0x21] sm:$0xff]
      %v943 = vld [vmem:[%s931 + $0x31] sm:$0xff]
      %v944 = vld [vmem:[%s931 + $0x41] sm:$0xff]
      %v945 = vld [vmem:[%s931 + $0x51] sm:$0xff]
      %v946 = vld [vmem:[%s931 + $0x61] sm:$0xff]
      %v947 = vld [vmem:[%s931 + $0x71] sm:$0xff]
      %v948 = vld [vmem:[%s931 + $0x2] sm:$0xff]
      %v949 = vld [vmem:[%s931 + $0x12] sm:$0xff]
      %v950 = vld [vmem:[%s931 + $0x22] sm:$0xff]
      %v951 = vld [vmem:[%s931 + $0x32] sm:$0xff]
      %v952 = vld [vmem:[%s931 + $0x42] sm:$0xff]
      %v953 = vld [vmem:[%s931 + $0x52] sm:$0xff]
      %v954 = vld [vmem:[%s931 + $0x62] sm:$0xff]
      %v955 = vld [vmem:[%s931 + $0x72] sm:$0xff]
      %964 = vrot.lane.b32.xlu0 %v891, 8
      %v965 = vpop.permute.xlu0 %964
      %966 = vrot.lane.b32.xlu0 %v892, 8
      %v967 = vpop.permute.xlu0 %966
      %968 = vrot.lane.b32.xlu0 %v893, 8
      %v969 = vpop.permute.xlu0 %968
      %970 = vrot.lane.b32.xlu0 %v894, 8
      %v971 = vpop.permute.xlu0 %970
      %972 = vrot.lane.b32.xlu0 %v895, 8
      %v973 = vpop.permute.xlu0 %972
      %974 = vrot.lane.b32.xlu0 %v896, 8
      %v975 = vpop.permute.xlu0 %974
      %976 = vrot.lane.b32.xlu0 %v897, 8
      %v977 = vpop.permute.xlu0 %976
      %978 = vrot.lane.b32.xlu0 %v898, 8
      %v979 = vpop.permute.xlu0 %978
      %996 = vrot.lane.b32.xlu0 %v899, 16
      %v997 = vpop.permute.xlu0 %996
      %998 = vrot.lane.b32.xlu0 %v900, 16
      %v999 = vpop.permute.xlu0 %998
      %1000 = vrot.lane.b32.xlu0 %v901, 16
      %v1001 = vpop.permute.xlu0 %1000
      %1002 = vrot.lane.b32.xlu0 %v902, 16
      %v1003 = vpop.permute.xlu0 %1002
      %1004 = vrot.lane.b32.xlu0 %v903, 16
      %v1005 = vpop.permute.xlu0 %1004
      %1006 = vrot.lane.b32.xlu0 %v904, 16
      %v1007 = vpop.permute.xlu0 %1006
      %1008 = vrot.lane.b32.xlu0 %v905, 16
      %v1009 = vpop.permute.xlu0 %1008
      %1010 = vrot.lane.b32.xlu0 %v906, 16
      %v1011 = vpop.permute.xlu0 %1010
      %1028 = vrot.lane.b32.xlu0 %v907, 24
      %v1029 = vpop.permute.xlu0 %1028
      %1030 = vrot.lane.b32.xlu0 %v908, 24
      %v1031 = vpop.permute.xlu0 %1030
      %1032 = vrot.lane.b32.xlu0 %v909, 24
      %v1033 = vpop.permute.xlu0 %1032
      %1034 = vrot.lane.b32.xlu0 %v910, 24
      %v1035 = vpop.permute.xlu0 %1034
      %1036 = vrot.lane.b32.xlu0 %v911, 24
      %v1037 = vpop.permute.xlu0 %1036
      %1038 = vrot.lane.b32.xlu0 %v912, 24
      %v1039 = vpop.permute.xlu0 %1038
      %1040 = vrot.lane.b32.xlu0 %v913, 24
      %v1041 = vpop.permute.xlu0 %1040
      %1042 = vrot.lane.b32.xlu0 %v914, 24
      %v1043 = vpop.permute.xlu0 %1042
      %1060 = vrot.lane.b32.xlu0 %v915, 32
      %v1061 = vpop.permute.xlu0 %1060
      %1062 = vrot.lane.b32.xlu0 %v916, 32
      %v1063 = vpop.permute.xlu0 %1062
      %1064 = vrot.lane.b32.xlu0 %v917, 32
      %v1065 = vpop.permute.xlu0 %1064
      %1066 = vrot.lane.b32.xlu0 %v918, 32
      %v1067 = vpop.permute.xlu0 %1066
      %1068 = vrot.lane.b32.xlu0 %v919, 32
      %v1069 = vpop.permute.xlu0 %1068
      %1070 = vrot.lane.b32.xlu0 %v920, 32
      %v1071 = vpop.permute.xlu0 %1070
      %1072 = vrot.lane.b32.xlu0 %v921, 32
      %v1073 = vpop.permute.xlu0 %1072
      %1074 = vrot.lane.b32.xlu0 %v922, 32
      %v1075 = vpop.permute.xlu0 %1074
      %1092 = vrot.lane.b32.xlu0 %v923, 40
      %v1093 = vpop.permute.xlu0 %1092
      %1094 = vrot.lane.b32.xlu0 %v924, 40
      %v1095 = vpop.permute.xlu0 %1094
      %1096 = vrot.lane.b32.xlu0 %v925, 40
      %v1097 = vpop.permute.xlu0 %1096
      %1098 = vrot.lane.b32.xlu0 %v926, 40
      %v1099 = vpop.permute.xlu0 %1098
      %1100 = vrot.lane.b32.xlu0 %v927, 40
      %v1101 = vpop.permute.xlu0 %1100
      %1102 = vrot.lane.b32.xlu0 %v928, 40
      %v1103 = vpop.permute.xlu0 %1102
      %1104 = vrot.lane.b32.xlu0 %v929, 40
      %v1105 = vpop.permute.xlu0 %1104
      %1106 = vrot.lane.b32.xlu0 %v930, 40
      %v1107 = vpop.permute.xlu0 %1106
      %1124 = vrot.lane.b32.xlu0 %v932, 48
      %v1125 = vpop.permute.xlu0 %1124
      %1126 = vrot.lane.b32.xlu0 %v933, 48
      %v1127 = vpop.permute.xlu0 %1126
      %1128 = vrot.lane.b32.xlu0 %v934, 48
      %v1129 = vpop.permute.xlu0 %1128
      %1130 = vrot.lane.b32.xlu0 %v935, 48
      %v1131 = vpop.permute.xlu0 %1130
      %1132 = vrot.lane.b32.xlu0 %v936, 48
      %v1133 = vpop.permute.xlu0 %1132
      %1134 = vrot.lane.b32.xlu0 %v937, 48
      %v1135 = vpop.permute.xlu0 %1134
      %1136 = vrot.lane.b32.xlu0 %v938, 48
      %v1137 = vpop.permute.xlu0 %1136
      %1138 = vrot.lane.b32.xlu0 %v939, 48
      %v1139 = vpop.permute.xlu0 %1138
      %1156 = vrot.lane.b32.xlu0 %v940, 56
      %v1157 = vpop.permute.xlu0 %1156
      %1158 = vrot.lane.b32.xlu0 %v941, 56
      %v1159 = vpop.permute.xlu0 %1158
      %1160 = vrot.lane.b32.xlu0 %v942, 56
      %v1161 = vpop.permute.xlu0 %1160
      %1162 = vrot.lane.b32.xlu0 %v943, 56
      %v1163 = vpop.permute.xlu0 %1162
      %1164 = vrot.lane.b32.xlu0 %v944, 56
      %v1165 = vpop.permute.xlu0 %1164
      %1166 = vrot.lane.b32.xlu0 %v945, 56
      %v1167 = vpop.permute.xlu0 %1166
      %1168 = vrot.lane.b32.xlu0 %v946, 56
      %v1169 = vpop.permute.xlu0 %1168
      %1170 = vrot.lane.b32.xlu0 %v947, 56
      %v1171 = vpop.permute.xlu0 %1170
      %1188 = vrot.lane.b32.xlu0 %v948, 64
      %v1189 = vpop.permute.xlu0 %1188
      %1190 = vrot.lane.b32.xlu0 %v949, 64
      %v1191 = vpop.permute.xlu0 %1190
      %1192 = vrot.lane.b32.xlu0 %v950, 64
      %v1193 = vpop.permute.xlu0 %1192
      %1194 = vrot.lane.b32.xlu0 %v951, 64
      %v1195 = vpop.permute.xlu0 %1194
      %1196 = vrot.lane.b32.xlu0 %v952, 64
      %v1197 = vpop.permute.xlu0 %1196
      %1198 = vrot.lane.b32.xlu0 %v953, 64
      %v1199 = vpop.permute.xlu0 %1198
      %1200 = vrot.lane.b32.xlu0 %v954, 64
      %v1201 = vpop.permute.xlu0 %1200
      %1202 = vrot.lane.b32.xlu0 %v955, 64
      %v1203 = vpop.permute.xlu0 %1202
      %v1212 = vsel %vm249, %v883, %v965
      %v1213 = vsel %vm249, %v884, %v967
      %v1214 = vsel %vm249, %v885, %v969
      %v1215 = vsel %vm249, %v886, %v971
      %v1216 = vsel %vm249, %v887, %v973
      %v1217 = vsel %vm249, %v888, %v975
      %v1218 = vsel %vm249, %v889, %v977
      %v1219 = vsel %vm249, %v890, %v979
      %v1220 = vsel %vm709, %v1212, %v997
      %v1221 = vsel %vm709, %v1213, %v999
      %v1222 = vsel %vm709, %v1214, %v1001
      %v1223 = vsel %vm709, %v1215, %v1003
      %v1224 = vsel %vm709, %v1216, %v1005
      %v1225 = vsel %vm709, %v1217, %v1007
      %v1226 = vsel %vm709, %v1218, %v1009
      %v1227 = vsel %vm709, %v1219, %v1011
      %v1228 = vsel %vm727, %v1220, %v1029
      %v1229 = vsel %vm727, %v1221, %v1031
      %v1230 = vsel %vm727, %v1222, %v1033
      %v1231 = vsel %vm727, %v1223, %v1035
      %v1232 = vsel %vm727, %v1224, %v1037
      %v1233 = vsel %vm727, %v1225, %v1039
      %v1234 = vsel %vm727, %v1226, %v1041
      %v1235 = vsel %vm727, %v1227, %v1043
      %v1236 = vsel %vm745, %v1228, %v1061
      %v1237 = vsel %vm745, %v1229, %v1063
      %v1238 = vsel %vm745, %v1230, %v1065
      %v1239 = vsel %vm745, %v1231, %v1067
      %v1240 = vsel %vm745, %v1232, %v1069
      %v1241 = vsel %vm745, %v1233, %v1071
      %v1242 = vsel %vm745, %v1234, %v1073
      %v1243 = vsel %vm745, %v1235, %v1075
      %vm1244 = vcmask 326656
      %v1245 = vsel %vm1244, %v1236, %v1093
      %v1246 = vsel %vm1244, %v1237, %v1095
      %v1247 = vsel %vm1244, %v1238, %v1097
      %v1248 = vsel %vm1244, %v1239, %v1099
      %v1249 = vsel %vm1244, %v1240, %v1101
      %v1250 = vsel %vm1244, %v1241, %v1103
      %v1251 = vsel %vm1244, %v1242, %v1105
      %v1252 = vsel %vm1244, %v1243, %v1107
      %vm1253 = vcmask 392192
      %v1254 = vsel %vm1253, %v1245, %v1125
      %v1255 = vsel %vm1253, %v1246, %v1127
      %v1256 = vsel %vm1253, %v1247, %v1129
      %v1257 = vsel %vm1253, %v1248, %v1131
      %v1258 = vsel %vm1253, %v1249, %v1133
      %v1259 = vsel %vm1253, %v1250, %v1135
      %v1260 = vsel %vm1253, %v1251, %v1137
      %v1261 = vsel %vm1253, %v1252, %v1139
      %vm1262 = vcmask 457728
      %v1263 = vsel %vm1262, %v1254, %v1157
      %v1264 = vsel %vm1262, %v1255, %v1159
      %v1265 = vsel %vm1262, %v1256, %v1161
      %v1266 = vsel %vm1262, %v1257, %v1163
      %v1267 = vsel %vm1262, %v1258, %v1165
      %v1268 = vsel %vm1262, %v1259, %v1167
      %v1269 = vsel %vm1262, %v1260, %v1169
      %v1270 = vsel %vm1262, %v1261, %v1171
      %vm1271 = vcmask 523264
      %v1272 = vsel %vm1271, %v1263, %v1189
      %v1273 = vsel %vm1271, %v1264, %v1191
      %v1274 = vsel %vm1271, %v1265, %v1193
      %v1275 = vsel %vm1271, %v1266, %v1195
      %v1276 = vsel %vm1271, %v1267, %v1197
      %v1277 = vsel %vm1271, %v1268, %v1199
      %v1278 = vsel %vm1271, %v1269, %v1201
      %v1279 = vsel %vm1271, %v1270, %v1203
      %v1280 = vpack.c.bf16 %v1273, %v1272
      %v1281 = vpack.c.bf16 %v1275, %v1274
      %v1282 = vpack.c.bf16 %v1277, %v1276
      %v1283 = vpack.c.bf16 %v1279, %v1278
      %v1284 = vld [vmem:[%s3] sm:$0xf]
      %v1285 = vld [vmem:[%s3 + $0x4] sm:$0xf]
      %v1286 = vld [vmem:[%s3 + $0x8] sm:$0xf]
      %v1287 = vld [vmem:[%s3 + $0xc] sm:$0xf]
      %v1288 = vld [vmem:[%s3 + $0x10] sm:$0xf]
      %v1289 = vld [vmem:[%s3 + $0x14] sm:$0xf]
      %v1290 = vld [vmem:[%s3 + $0x18] sm:$0xf]
      %v1291 = vld [vmem:[%s3 + $0x1c] sm:$0xf]
      %v1292 = vld [vmem:[%s3 + $0x20] sm:$0xf]
      %v1293 = vld [vmem:[%s4] sm:$0x1]
      %v1295 = vlaneseq
      %v1296 = vshrl.u32 %v1295, 7
      %v1297 = vsub.s32 0, %v1296
      %v1298 = vrot.slane %v1293, %v1297
      %v1309 = vunpack.c.l.b16 %v1284
      %v1310 = vunpack.c.l.b16 %v1285
      %v1311 = vunpack.c.l.b16 %v1286
      %v1312 = vunpack.c.l.b16 %v1287
      %v1313 = vunpack.c.l.b16 %v1288
      %v1314 = vunpack.c.l.b16 %v1289
      %v1315 = vunpack.c.l.b16 %v1290
      %v1316 = vunpack.c.l.b16 %v1291
      %v1317 = vunpack.c.l.b16 %v1292
      %v1318 = vpack.c.b16 %v1310, %v1309
      %v1319 = vpack.c.b16 %v1312, %v1311
      %v1320 = vpack.c.b16 %v1314, %v1313
      %v1321 = vpack.c.b16 %v1316, %v1315
      %v1322 = vpack.c.b16 %v1317, %v1317
      %vm1327 = vcmask 588800
      %v1329 = vsel %vm1327, %v1280, 0
      %v1332 = vsel %vm1327, %v1281, 0
      %v1335 = vsel %vm1327, %v1282, 0
      %v1338 = vsel %vm1327, %v1283, 0
      %vm1340 = vcmask 1043456
      %v1342 = vsel %vm1340, %v1322, 0
      %1344 = vmatprep.subr.bf16.mxu0 0
      %1345 = vmatpush1.bf16.msra.mxu0 %v1318
      %1346 = vmatprep.subr.bf16.mxu0 0
      %1347 = vmatpush1.bf16.msra.mxu0 %v1319
      %1348 = vmatprep.subr.bf16.mxu0 0
      %1349 = vmatpush1.bf16.msra.mxu0 %v1320
      %1350 = vmatprep.subr.bf16.mxu0 0
      %1351 = vmatpush1.bf16.msra.mxu0 %v1321
      %1352 = vmatprep.subr.bf16.mxu0 0
      %1353 = vmatpush1.bf16.msra.mxu0 %v1342
      %1354 = vmatprep.subr.bf16.mxu0 0
      %1355 = vmatpush1.bf16.msra.mxu0 0
      %1356 = vmatprep.subr.bf16.mxu0 0
      %1357 = vmatpush1.bf16.msra.mxu0 0
      %1358 = vmatprep.subr.bf16.mxu0 0
      %1359 = vmatpush1.bf16.msra.mxu0 0
      %1360 = vmatprep.subr.bf16.mxu0 0
      %1361 = vmatpush1.bf16.msra.mxu0 0
      %1362 = vmatprep.subr.bf16.mxu0 0
      %1363 = vmatpush1.bf16.msra.mxu0 0
      %1364 = vmatprep.subr.bf16.mxu0 0
      %1365 = vmatpush1.bf16.msra.mxu0 0
      %1366 = vmatprep.subr.bf16.mxu0 0
      %1367 = vmatpush1.bf16.msra.mxu0 0
      %1368 = vmatprep.subr.bf16.mxu0 0
      %1369 = vmatpush1.bf16.msra.mxu0 0
      %1370 = vmatprep.subr.bf16.mxu0 0
      %1371 = vmatpush1.bf16.msra.mxu0 0
      %1372 = vmatprep.subr.bf16.mxu0 0
      %1373 = vmatpush1.bf16.msra.mxu0 0
      %1374 = vmatprep.subr.bf16.mxu0 0
      %1375 = vmatpush1.bf16.msra.mxu0 0
      %1376 = vmatprep.mubr.bf16.mxu0 0
      %1377 = vmatmul.mubr.bf16.gmra.mrb[0].mxu0 %v1329
      %v1378 = vpop.f32.mrb[0].mxu0
      %v1379 = vadd.f32 %v1298, %v1378
      %v1380 = vpop.f32.mrb[0].mxu0
      %v1381 = vpop.f32.mrb[0].mxu0
      %v1382 = vadd.f32 %v1298, %v1381
      %v1383 = vpop.f32.mrb[0].mxu0
      %1384 = vmatprep.mubr.bf16.mxu0 0
      %1385 = vmatmul.mubr.bf16.gmra.mrb[0].mxu0 %v1332
      %v1386 = vpop.f32.mrb[0].mxu0
      %v1387 = vadd.f32 %v1298, %v1386
      %v1388 = vpop.f32.mrb[0].mxu0
      %v1389 = vpop.f32.mrb[0].mxu0
      %v1390 = vadd.f32 %v1298, %v1389
      %v1391 = vpop.f32.mrb[0].mxu0
      %1392 = vmatprep.mubr.bf16.mxu0 0
      %1393 = vmatmul.mubr.bf16.gmra.mrb[0].mxu0 %v1335
      %v1394 = vpop.f32.mrb[0].mxu0
      %v1395 = vadd.f32 %v1298, %v1394
      %v1396 = vpop.f32.mrb[0].mxu0
      %v1397 = vpop.f32.mrb[0].mxu0
      %v1398 = vadd.f32 %v1298, %v1397
      %v1399 = vpop.f32.mrb[0].mxu0
      %1400 = vmatprep.mubr.bf16.mxu0 0
      %1401 = vmatmul.mubr.bf16.gmra.mrb[0].mxu0 %v1338
      %v1402 = vpop.f32.mrb[0].mxu0
      %v1403 = vadd.f32 %v1298, %v1402
      %v1404 = vpop.f32.mrb[0].mxu0
      %v1405 = vpop.f32.mrb[0].mxu0
      %v1406 = vadd.f32 %v1298, %v1405
      %v1407 = vpop.f32.mrb[0].mxu0
      %1408 = vdwg.mxu0
      %v1409 = vmax.f32 %v1379, 0.0
      %v1410 = vmax.f32 %v1382, 0.0
      %v1411 = vmax.f32 %v1387, 0.0
      %v1412 = vmax.f32 %v1390, 0.0
      %v1413 = vmax.f32 %v1395, 0.0
      %v1414 = vmax.f32 %v1398, 0.0
      %v1415 = vmax.f32 %v1403, 0.0
      %v1416 = vmax.f32 %v1406, 0.0
      %v1425 = vrot.slane %v1410, 7
      %vm1426 = vcmask 1041409
      %v1427 = vsel %vm1426, %v1425, %v1409
      %v1428 = vrot.slane %v1411, 6
      %vm1429 = vcmask 1042434
      %v1430 = vsel %vm1429, %v1428, %v1427
      %v1431 = vrot.slane %v1412, 5
      %vm1432 = vcmask 1043459
      %v1433 = vsel %vm1432, %v1431, %v1430
      %v1434 = vrot.slane %v1413, 4
      %vm1435 = vcmask 1044484
      %v1436 = vsel %vm1435, %v1434, %v1433
      %v1437 = vrot.slane %v1414, 3
      %vm1438 = vcmask 1045509
      %v1439 = vsel %vm1438, %v1437, %v1436
      %v1440 = vrot.slane %v1415, 2
      %vm1441 = vcmask 1046534
      %v1442 = vsel %vm1441, %v1440, %v1439
      %v1443 = vrot.slane %v1416, 1
      %vm1444 = vcmask 1047559
      %v1445 = vsel %vm1444, %v1443, %v1442
      %v1447 = vrot.slane %v1409, 1
      %v1448 = vsel %vm1426, %v1410, %v1447
      %v1449 = vrot.slane %v1411, 7
      %v1450 = vsel %vm1429, %v1449, %v1448
      %v1451 = vrot.slane %v1412, 6
      %v1452 = vsel %vm1432, %v1451, %v1450
      %v1453 = vrot.slane %v1413, 5
      %v1454 = vsel %vm1435, %v1453, %v1452
      %v1455 = vrot.slane %v1414, 4
      %v1456 = vsel %vm1438, %v1455, %v1454
      %v1457 = vrot.slane %v1415, 3
      %v1458 = vsel %vm1441, %v1457, %v1456
      %v1459 = vrot.slane %v1416, 2
      %v1460 = vsel %vm1444, %v1459, %v1458
      %1461 = vrot.lane.b32.xlu0 %v1460, 8
      %v1462 = vpop.permute.xlu0 %1461
      %v1464 = vrot.slane %v1409, 2
      %v1465 = vrot.slane %v1410, 1
      %v1466 = vsel %vm1426, %v1465, %v1464
      %v1467 = vsel %vm1429, %v1411, %v1466
      %v1468 = vrot.slane %v1412, 7
      %v1469 = vsel %vm1432, %v1468, %v1467
      %v1470 = vrot.slane %v1413, 6
      %v1471 = vsel %vm1435, %v1470, %v1469
      %v1472 = vrot.slane %v1414, 5
      %v1473 = vsel %vm1438, %v1472, %v1471
      %v1474 = vrot.slane %v1415, 4
      %v1475 = vsel %vm1441, %v1474, %v1473
      %v1476 = vrot.slane %v1416, 3
      %v1477 = vsel %vm1444, %v1476, %v1475
      %1478 = vrot.lane.b32.xlu0 %v1477, 16
      %v1479 = vpop.permute.xlu0 %1478
      %v1481 = vrot.slane %v1409, 3
      %v1482 = vrot.slane %v1410, 2
      %v1483 = vsel %vm1426, %v1482, %v1481
      %v1484 = vrot.slane %v1411, 1
      %v1485 = vsel %vm1429, %v1484, %v1483
      %v1486 = vsel %vm1432, %v1412, %v1485
      %v1487 = vrot.slane %v1413, 7
      %v1488 = vsel %vm1435, %v1487, %v1486
      %v1489 = vrot.slane %v1414, 6
      %v1490 = vsel %vm1438, %v1489, %v1488
      %v1491 = vrot.slane %v1415, 5
      %v1492 = vsel %vm1441, %v1491, %v1490
      %v1493 = vrot.slane %v1416, 4
      %v1494 = vsel %vm1444, %v1493, %v1492
      %1495 = vrot.lane.b32.xlu0 %v1494, 24
      %v1496 = vpop.permute.xlu0 %1495
      %v1498 = vrot.slane %v1409, 4
      %v1499 = vrot.slane %v1410, 3
      %v1500 = vsel %vm1426, %v1499, %v1498
      %v1501 = vrot.slane %v1411, 2
      %v1502 = vsel %vm1429, %v1501, %v1500
      %v1503 = vrot.slane %v1412, 1
      %v1504 = vsel %vm1432, %v1503, %v1502
      %v1505 = vsel %vm1435, %v1413, %v1504
      %v1506 = vrot.slane %v1414, 7
      %v1507 = vsel %vm1438, %v1506, %v1505
      %v1508 = vrot.slane %v1415, 6
      %v1509 = vsel %vm1441, %v1508, %v1507
      %v1510 = vrot.slane %v1416, 5
      %v1511 = vsel %vm1444, %v1510, %v1509
      %1512 = vrot.lane.b32.xlu0 %v1511, 32
      %v1513 = vpop.permute.xlu0 %1512
      %v1515 = vrot.slane %v1409, 5
      %v1516 = vrot.slane %v1410, 4
      %v1517 = vsel %vm1426, %v1516, %v1515
      %v1518 = vrot.slane %v1411, 3
      %v1519 = vsel %vm1429, %v1518, %v1517
      %v1520 = vrot.slane %v1412, 2
      %v1521 = vsel %vm1432, %v1520, %v1519
      %v1522 = vrot.slane %v1413, 1
      %v1523 = vsel %vm1435, %v1522, %v1521
      %v1524 = vsel %vm1438, %v1414, %v1523
      %v1525 = vrot.slane %v1415, 7
      %v1526 = vsel %vm1441, %v1525, %v1524
      %v1527 = vrot.slane %v1416, 6
      %v1528 = vsel %vm1444, %v1527, %v1526
      %1529 = vrot.lane.b32.xlu0 %v1528, 40
      %v1530 = vpop.permute.xlu0 %1529
      %v1532 = vrot.slane %v1409, 6
      %v1533 = vrot.slane %v1410, 5
      %v1534 = vsel %vm1426, %v1533, %v1532
      %v1535 = vrot.slane %v1411, 4
      %v1536 = vsel %vm1429, %v1535, %v1534
      %v1537 = vrot.slane %v1412, 3
      %v1538 = vsel %vm1432, %v1537, %v1536
      %v1539 = vrot.slane %v1413, 2
      %v1540 = vsel %vm1435, %v1539, %v1538
      %v1541 = vrot.slane %v1414, 1
      %v1542 = vsel %vm1438, %v1541, %v1540
      %v1543 = vsel %vm1441, %v1415, %v1542
      %v1544 = vrot.slane %v1416, 7
      %v1545 = vsel %vm1444, %v1544, %v1543
      %1546 = vrot.lane.b32.xlu0 %v1545, 48
      %v1547 = vpop.permute.xlu0 %1546
      %v1549 = vrot.slane %v1409, 7
      %v1550 = vrot.slane %v1410, 6
      %v1551 = vsel %vm1426, %v1550, %v1549
      %v1552 = vrot.slane %v1411, 5
      %v1553 = vsel %vm1429, %v1552, %v1551
      %v1554 = vrot.slane %v1412, 4
      %v1555 = vsel %vm1432, %v1554, %v1553
      %v1556 = vrot.slane %v1413, 3
      %v1557 = vsel %vm1435, %v1556, %v1555
      %v1558 = vrot.slane %v1414, 2
      %v1559 = vsel %vm1438, %v1558, %v1557
      %v1560 = vrot.slane %v1415, 1
      %v1561 = vsel %vm1441, %v1560, %v1559
      %v1562 = vsel %vm1444, %v1416, %v1561
      %1563 = vrot.lane.b32.xlu0 %v1562, 56
      %v1564 = vpop.permute.xlu0 %1563
      %v1566 = vsel %vm249, %v1445, %v1462
      %v1567 = vsel %vm709, %v1566, %v1479
      %v1568 = vsel %vm727, %v1567, %v1496
      %v1569 = vsel %vm745, %v1568, %v1513
      %v1570 = vsel %vm1244, %v1569, %v1530
      %v1571 = vsel %vm1253, %v1570, %v1547
      %v1572 = vsel %vm1262, %v1571, %v1564
      %v1573 = vpack.c.bf16 %v1572, %v1572
      %vm1574 = vcmask 519168
      %1575 = vst.msk [vmem:[%s222] sm:$0xf] %vm1574, %v1573
      %p1576 = scmp.lt.s32.totalorder %s16, 1
      %s1577 = scalar_select %p1576, %s16, 1
      %s1578 = smul.addr %s1577, 4
      %s1579 = scalar_lea.vmem %s5, %s1578
      // Predicated region
      $region41: #{down_forward.1} parent=39 // pred_check
        %p1580 = pneg %p144
      $region42: #{down_forward.1} parent=39 // pred_check_branch
        %1582 = sbr.rel (%p1580) target = $region44
      $region43: #{down_forward.1} parent=39 // pred_region
        _
      $region44: #{down_forward.1} parent=39 // pred_fallthru
        _
    $region40: #{down_forward.1} parent=5 // pred_fallthru
      _
    %p1583 = scmp.le.s32.totalorder 2, %s11
    // Predicated region
    $region45: #{down_forward.1} parent=5 // pred_check
      %p1584 = pneg %p1583
    $region46: #{down_forward.1} parent=5 // pred_check_branch
      %1586 = sbr.rel (%p1584) target = $region48
    $region47: #{down_forward.1} parent=5 // pred_region
      %s1587 = ssub.s32 %s11, 2
      // Predicated region
      $region49: #{down_forward.1} parent=47 // pred_check
        %p1588 = pneg %p150
      $region50: #{down_forward.1} parent=47 // pred_check_branch
        %1590 = sbr.rel (%p1588) target = $region52
      $region51: #{down_forward.1} parent=47 // pred_region
        %p1591 = scmp.lt.s32.totalorder %s17, 1
        %s1592 = scalar_select %p1591, %s17, 1
        %s1593 = smul.addr %s1592, 4
        %s1594 = scalar_lea.vmem %s5, %s1593
      $region52: #{down_forward.1} parent=47 // pred_fallthru
        _
    $region48: #{down_forward.1} parent=5 // pred_fallthru
      _
  $region6: #{down_forward.1} parent=0 // loop_footer
    %s15 = sadd.s32 1, %s11
  $region7: #{down_forward.1} parent=0 // loop_footer_branch
    %10 = sbr.rel target = $region3
  $region8: #{down_forward.1} parent=0 // loop_exit
    _

</llo_original>
